<compile_context>
chip_gen: v5e
topology: v5e:2x2
jax: 0.10.0
libtpu: 0.0.40
codegen_flags: <defaults>
</compile_context>

<pallas_src>
import jax
import jax.numpy as jnp
import numpy as np
from jax.experimental import pallas as pl
from jax.experimental.pallas import tpu as pltpu

EPS = 1e-5          # nn.BatchNorm3d default eps
KTAPS = 27          # 3*3*3 conv taps


def _round_up(x, m):
    return (x + m - 1) // m * m


def _cdiv(a, b):
    return -(-a // b)


# ----------------------------------------------------------------------------
# Pallas kernels
# ----------------------------------------------------------------------------
def _conv_call(N, Cin, Cout, TM, MT, offsets, cdtype):
    """Conv3d(k=3, s=1, p=1, bias=False) on the padded-flat layout.

    Per grid step (n, m): build a (27*Cin, TM) im2col tile in VMEM scratch from
    two adjacent lane blocks of the padded-flat activation (block m + halo
    block m+1), run a single (Cout, 27*Cin) @ (27*Cin, TM) MXU contraction,
    mask out pad/garbage lanes and emit per-channel sum / sum^2 partials.
    """
    KC = KTAPS * Cin

    def kernel(xa_ref, xb_ref, w_ref, mask_ref, y_ref, s_ref, q_ref, a_scr):
        # (Cin, 2*TM) window = current block + halo block (all lane dense).
        xw = jnp.concatenate([xa_ref[0], xb_ref[0]], axis=1)
        # Build the im2col tile: tap t occupies rows [t*Cin, (t+1)*Cin).
        for t, off in enumerate(offsets):                      # static unroll
            a_scr[t * Cin:(t + 1) * Cin, :] = jax.lax.slice(
                xw, (0, off), (Cin, off + TM))
        # Single K = 27*Cin contraction; output (Cout, TM) is lane dense.
        y = jnp.dot(w_ref[...], a_scr[...],
                    preferred_element_type=jnp.float32)        # (Cout, TM)
        y = y * mask_ref[...]                                  # zero pad/garbage
        y_ref[0] = y
        # Per-channel partials for the fused BatchNorm statistics.
        s_ref[0, 0] = jnp.sum(y, axis=1, keepdims=True)
        q_ref[0, 0] = jnp.sum(y * y, axis=1, keepdims=True)

    itemsize = jnp.dtype(cdtype).itemsize
    vmem_est = (2 * 2 * Cin * TM * itemsize        # two halo'd input blocks, 2x buffered
                + 2 * Cout * KC * itemsize         # packed weights
                + 2 * TM * 4 + 2 * Cout * TM * 4   # mask + output tile
                + KC * TM * itemsize               # im2col scratch
                + (2 << 20))                       # headroom
    params = dict(dimension_semantics=("parallel", "parallel"))
    if vmem_est > (16 << 20):                      # raise scoped limit only if needed
        params["vmem_limit_bytes"] = min(2 * vmem_est, 100 << 20)

    return pl.pallas_call(
        kernel,
        out_shape=(
            jax.ShapeDtypeStruct((N, Cout, MT * TM), jnp.float32),
            jax.ShapeDtypeStruct((N, MT, Cout, 1), jnp.float32),
            jax.ShapeDtypeStruct((N, MT, Cout, 1), jnp.float32),
        ),
        grid=(N, MT),
        in_specs=[
            pl.BlockSpec((1, Cin, TM), lambda n, m: (n, 0, m)),       # block m
            pl.BlockSpec((1, Cin, TM), lambda n, m: (n, 0, m + 1)),   # halo block
            pl.BlockSpec((Cout, KC), lambda n, m: (0, 0)),            # packed weights
            pl.BlockSpec((1, TM), lambda n, m: (0, m)),               # validity mask
        ],
        out_specs=(
            pl.BlockSpec((1, Cout, TM), lambda n, m: (n, 0, m)),
            pl.BlockSpec((1, 1, Cout, 1), lambda n, m: (n, m, 0, 0)),
            pl.BlockSpec((1, 1, Cout, 1), lambda n, m: (n, m, 0, 0)),
        ),
        scratch_shapes=[pltpu.VMEM((KC, TM), cdtype)],
        compiler_params=pltpu.CompilerParams(**params),
    )


def _bn_call(N, Cout, TM, MT, with_residual):
    """y*scale + shift (+ residual) -> ReLU -> re-mask pads, tiled elementwise."""
    def kernel(*refs):
        if with_residual:
            y_ref, sc_ref, sh_ref, mask_ref, r_ref, o_ref = refs
        else:
            y_ref, sc_ref, sh_ref, mask_ref, o_ref = refs
        out = y_ref[0] * sc_ref[...] + sh_ref[...]
        if with_residual:
            out = out + r_ref[0]
        o_ref[0] = jnp.maximum(out, 0.0) * mask_ref[...]

    in_specs = [
        pl.BlockSpec((1, Cout, TM), lambda n, m: (n, 0, m)),
        pl.BlockSpec((Cout, 1), lambda n, m: (0, 0)),
        pl.BlockSpec((Cout, 1), lambda n, m: (0, 0)),
        pl.BlockSpec((1, TM), lambda n, m: (0, m)),
    ]
    if with_residual:
        in_specs.append(pl.BlockSpec((1, Cout, TM), lambda n, m: (n, 0, m)))

    return pl.pallas_call(
        kernel,
        out_shape=jax.ShapeDtypeStruct((N, Cout, MT * TM), jnp.float32),
        grid=(N, MT),
        in_specs=in_specs,
        out_specs=pl.BlockSpec((1, Cout, TM), lambda n, m: (n, 0, m)),
        compiler_params=pltpu.CompilerParams(
            dimension_semantics=("parallel", "parallel")),
    )


# ----------------------------------------------------------------------------
# JAX glue
# ----------------------------------------------------------------------------
def basic_block_3d(x, w1, w2, g1, b1, g2, b2, *, compute_dtype=jnp.float32):
    """Forward pass of BasicBlock3D(in_c, out_c, stride=1, downsample=None)."""
    N, C, D, H, W = x.shape
    Cout = w1.shape[0]
    assert C == Cout, "identity residual requires in_channels == out_channels"

    Hp, Wp = H + 2, W + 2
    HpWp = Hp * Wp
    Mp = D * HpWp                        # padded-flat output length (per batch)
    SHIFT = HpWp + Wp + 1                # flat offset of coord (1,1,1)
    offsets = [kd * HpWp + kh * Wp + kw
               for kd in range(3) for kh in range(3) for kw in range(3)]
    OFFMAX = offsets[-1]                 # 2*HpWp + 2*Wp + 2

    # Spatial tile: must cover the tap halo, lane friendly, big enough to
    # amortize per-step overhead.
    TM = max(256, _round_up(OFFMAX + 1, 128))
    while TM < 2048 and _cdiv(Mp, TM) > 8:
        TM *= 2
    MT = _cdiv(Mp, TM)
    Mpr = MT * TM                        # rounded output length
    Lin = (MT + 1) * TM                  # +1 block so the halo block always exists

    x = x.astype(jnp.float32)

    def to_flat(vol):                    # (N,C,D,H,W) -> (N,C,Lin) padded-flat
        p = jnp.pad(vol, ((0, 0), (0, 0), (1, 1), (1, 1), (1, 1)))
        p = p.reshape(N, C, (D + 2) * HpWp)
        return jnp.pad(p, ((0, 0), (0, 0), (0, Lin - (D + 2) * HpWp)))

    xflat = to_flat(x)                   # f32; also the residual source

    # Validity mask over the padded-flat output frame (1 = real voxel).
    idx = np.arange(Mpr)
    valid = ((idx % Wp < W) & ((idx // Wp) % Hp < H) & (idx // HpWp < D))
    mask = jnp.asarray(valid.astype(np.float32)).reshape(1, Mpr)

    def pack_w(w):                       # (Cout,Cin,3,3,3) -> (Cout, 27*Cin)
        cin = w.shape[1]
        return (jnp.transpose(w, (0, 2, 3, 4, 1))
                .reshape(Cout, KTAPS * cin).astype(compute_dtype))

    conv1 = _conv_call(N, C, Cout, TM, MT, offsets, compute_dtype)
    conv2 = _conv_call(N, Cout, Cout, TM, MT, offsets, compute_dtype)
    bn_relu = _bn_call(N, Cout, TM, MT, with_residual=False)
    bn_add_relu = _bn_call(N, Cout, TM, MT, with_residual=True)

    count = float(N * D * H * W)

    def bn_params(s, q, g, b):           # tiny per-channel reduction in XLA
        ssum = jnp.sum(s, axis=(0, 1))[:, 0]
        sqsum = jnp.sum(q, axis=(0, 1))[:, 0]
        mean = ssum / count
        var = jnp.maximum(sqsum / count - mean * mean, 0.0)
        scale = g.astype(jnp.float32) * jax.lax.rsqrt(var + EPS)
        shift = b.astype(jnp.float32) - mean * scale
        return scale.reshape(Cout, 1), shift.reshape(Cout, 1)

    # conv1 -> bn1 -> relu
    xc = xflat.astype(compute_dtype)
    y1, s1, q1 = conv1(xc, xc, pack_w(w1), mask)
    sc1, sh1 = bn_params(s1, q1, g1, b1)
    h1 = bn_relu(y1, sc1, sh1, mask)                 # (N,Cout,Mpr), pads zeroed

    # Re-pad h1 into conv2's padded-flat frame (one cheap XLA pad, no 27x copy).
    h1f = jnp.pad(h1, ((0, 0), (0, 0), (SHIFT, Lin - SHIFT - Mpr)))
    h1c = h1f.astype(compute_dtype)

    # conv2 -> bn2 -> (+identity) -> relu
    y2, s2, q2 = conv2(h1c, h1c, pack_w(w2), mask)
    sc2, sh2 = bn_params(s2, q2, g2, b2)
    res = jax.lax.slice(xflat, (0, 0, SHIFT), (N, C, SHIFT + Mpr))
    out = bn_add_relu(y2, sc2, sh2, mask, res)

    # padded-flat -> NCDHW
    out = out[:, :, :Mp].reshape(N, Cout, D, Hp, Wp)[:, :, :, :H, :W]
    return out


# ----------------------------------------------------------------------------
# Pure-JAX reference (correctness check)
# ----------------------------------------------------------------------------
def _ref_forward(x, w1, w2, g1, b1, g2, b2):
    def conv(x, w):
        return jax.lax.conv_general_dilated(
            x, w, window_strides=(1, 1, 1), padding=((1, 1),) * 3,
            dimension_numbers=("NCDHW", "OIDHW", "NCDHW"))

    def bn(y, g, b):
        mean = jnp.mean(y, axis=(0, 2, 3, 4), keepdims=True)
        var = jnp.mean((y - mean) ** 2, axis=(0, 2, 3, 4), keepdims=True)
        gg = g.reshape(1, -1, 1, 1, 1)
        bb = b.reshape(1, -1, 1, 1, 1)
        return (y - mean) * jax.lax.rsqrt(var + EPS) * gg + bb

    out = jax.nn.relu(bn(conv(x, w1), g1, b1))
    out = bn(conv(out, w2), g2, b2) + x
    return jax.nn.relu(out)


if __name__ == "__main__":
    key = jax.random.PRNGKey(0)
    k1, k2, k3, k4, k5, k6, k7 = jax.random.split(key, 7)

    # in_channels == out_channels, stride=1, downsample=None (identity residual)
    N, C, D, H, W = 2, 8, 8, 8, 8
    x = jax.random.normal(k1, (N, C, D, H, W), jnp.float32)

    fan_in = C * 27
    w1 = jax.random.normal(k2, (C, C, 3, 3, 3), jnp.float32) / np.sqrt(fan_in)
    w2 = jax.random.normal(k3, (C, C, 3, 3, 3), jnp.float32) / np.sqrt(fan_in)
    g1 = 1.0 + 0.1 * jax.random.normal(k4, (C,), jnp.float32)
    b1 = 0.1 * jax.random.normal(k5, (C,), jnp.float32)
    g2 = 1.0 + 0.1 * jax.random.normal(k6, (C,), jnp.float32)
    b2 = 0.1 * jax.random.normal(k7, (C,), jnp.float32)

    out = jax.jit(basic_block_3d)(x, w1, w2, g1, b1, g2, b2)
    out = jax.block_until_ready(out)

    ref = _ref_forward(x, w1, w2, g1, b1, g2, b2)
    np.testing.assert_allclose(np.asarray(out), np.asarray(ref),
                               rtol=2e-4, atol=2e-4)
    print("KERNEL_OK")
</pallas_src>

<mosaic_0001>
module attributes {stable_mosaic.version = 11 : i64} {
  func.func @kernel(%arg0: i32, %arg1: i32, %arg2: memref<1x8x256xf32, #tpu.memory_space<vmem>>, %arg3: memref<1x8x256xf32, #tpu.memory_space<vmem>>, %arg4: memref<8x216xf32, #tpu.memory_space<vmem>>, %arg5: memref<1x256xf32, #tpu.memory_space<vmem>>, %arg6: memref<1x8x256xf32, #tpu.memory_space<vmem>>, %arg7: memref<1x1x8x1xf32, #tpu.memory_space<vmem>>, %arg8: memref<1x1x8x1xf32, #tpu.memory_space<vmem>>, %arg9: memref<216x256xf32, #tpu.memory_space<vmem>>) attributes {dimension_semantics = [#tpu.dimension_semantics<parallel>, #tpu.dimension_semantics<parallel>], iteration_bounds = array<i64: 2, 4>, scalar_prefetch = 0 : i64, scratch_operands = 1 : i64, tpu.core_type = #tpu.core_type<tc>, window_params = [{transform_indices = @transform_0, window_bounds = array<i64: 1, 8, 256>}, {transform_indices = @transform_1, window_bounds = array<i64: 1, 8, 256>}, {pipeline_mode = #tpu.pipeline_mode<synchronous>, transform_indices = @transform_2, window_bounds = array<i64: 8, 216>}, {transform_indices = @transform_3, window_bounds = array<i64: 1, 256>}, {transform_indices = @transform_4, window_bounds = array<i64: 1, 8, 256>}, {transform_indices = @transform_5, window_bounds = array<i64: 1, 1, 8, 1>}, {transform_indices = @transform_6, window_bounds = array<i64: 1, 1, 8, 1>}]} {
    %c0 = arith.constant 0 : index
    %c0_0 = arith.constant 0 : index
    %c0_1 = arith.constant 0 : index
    %0 = vector.load %arg2[%c0, %c0_0, %c0_1] : memref<1x8x256xf32, #tpu.memory_space<vmem>>, vector<1x8x256xf32>
    %1 = vector.shape_cast %0 : vector<1x8x256xf32> to vector<8x256xf32>
    %c0_2 = arith.constant 0 : index
    %c0_3 = arith.constant 0 : index
    %c0_4 = arith.constant 0 : index
    %2 = vector.load %arg3[%c0_2, %c0_3, %c0_4] : memref<1x8x256xf32, #tpu.memory_space<vmem>>, vector<1x8x256xf32>
    %3 = vector.shape_cast %2 : vector<1x8x256xf32> to vector<8x256xf32>
    %4 = tpu.concatenate %1, %3 in 1 : vector<8x256xf32>, vector<8x256xf32> -> vector<8x512xf32>
    %5 = vector.extract_strided_slice %4 {offsets = [0, 0], sizes = [8, 256], strides = [1, 1]} : vector<8x512xf32> to vector<8x256xf32>
    %c0_5 = arith.constant 0 : index
    %c0_6 = arith.constant 0 : index
    %6 = vector.load %arg9[%c0_5, %c0_6] : memref<216x256xf32, #tpu.memory_space<vmem>>, vector<8x256xf32>
    tpu.vector_store %arg9[%c0_5, %c0_6], %5 {strides = array<i32>} : memref<216x256xf32, #tpu.memory_space<vmem>>, vector<8x256xf32>,
    %7 = vector.extract_strided_slice %4 {offsets = [0, 1], sizes = [8, 256], strides = [1, 1]} : vector<8x512xf32> to vector<8x256xf32>
    %c8 = arith.constant 8 : index
    %c0_7 = arith.constant 0 : index
    %8 = vector.load %arg9[%c8, %c0_7] : memref<216x256xf32, #tpu.memory_space<vmem>>, vector<8x256xf32>
    tpu.vector_store %arg9[%c8, %c0_7], %7 {strides = array<i32>} : memref<216x256xf32, #tpu.memory_space<vmem>>, vector<8x256xf32>,
    %9 = vector.extract_strided_slice %4 {offsets = [0, 2], sizes = [8, 256], strides = [1, 1]} : vector<8x512xf32> to vector<8x256xf32>
    %c16 = arith.constant 16 : index
    %c0_8 = arith.constant 0 : index
    %10 = vector.load %arg9[%c16, %c0_8] : memref<216x256xf32, #tpu.memory_space<vmem>>, vector<8x256xf32>
    tpu.vector_store %arg9[%c16, %c0_8], %9 {strides = array<i32>} : memref<216x256xf32, #tpu.memory_space<vmem>>, vector<8x256xf32>,
    %11 = vector.extract_strided_slice %4 {offsets = [0, 10], sizes = [8, 256], strides = [1, 1]} : vector<8x512xf32> to vector<8x256xf32>
    %c24 = arith.constant 24 : index
    %c0_9 = arith.constant 0 : index
    %12 = vector.load %arg9[%c24, %c0_9] : memref<216x256xf32, #tpu.memory_space<vmem>>, vector<8x256xf32>
    tpu.vector_store %arg9[%c24, %c0_9], %11 {strides = array<i32>} : memref<216x256xf32, #tpu.memory_space<vmem>>, vector<8x256xf32>,
    %13 = vector.extract_strided_slice %4 {offsets = [0, 11], sizes = [8, 256], strides = [1, 1]} : vector<8x512xf32> to vector<8x256xf32>
    %c32 = arith.constant 32 : index
    %c0_10 = arith.constant 0 : index
    %14 = vector.load %arg9[%c32, %c0_10] : memref<216x256xf32, #tpu.memory_space<vmem>>, vector<8x256xf32>
    tpu.vector_store %arg9[%c32, %c0_10], %13 {strides = array<i32>} : memref<216x256xf32, #tpu.memory_space<vmem>>, vector<8x256xf32>,
    %15 = vector.extract_strided_slice %4 {offsets = [0, 12], sizes = [8, 256], strides = [1, 1]} : vector<8x512xf32> to vector<8x256xf32>
    %c40 = arith.constant 40 : index
    %c0_11 = arith.constant 0 : index
    %16 = vector.load %arg9[%c40, %c0_11] : memref<216x256xf32, #tpu.memory_space<vmem>>, vector<8x256xf32>
    tpu.vector_store %arg9[%c40, %c0_11], %15 {strides = array<i32>} : memref<216x256xf32, #tpu.memory_space<vmem>>, vector<8x256xf32>,
    %17 = vector.extract_strided_slice %4 {offsets = [0, 20], sizes = [8, 256], strides = [1, 1]} : vector<8x512xf32> to vector<8x256xf32>
    %c48 = arith.constant 48 : index
    %c0_12 = arith.constant 0 : index
    %18 = vector.load %arg9[%c48, %c0_12] : memref<216x256xf32, #tpu.memory_space<vmem>>, vector<8x256xf32>
    tpu.vector_store %arg9[%c48, %c0_12], %17 {strides = array<i32>} : memref<216x256xf32, #tpu.memory_space<vmem>>, vector<8x256xf32>,
    %19 = vector.extract_strided_slice %4 {offsets = [0, 21], sizes = [8, 256], strides = [1, 1]} : vector<8x512xf32> to vector<8x256xf32>
    %c56 = arith.constant 56 : index
    %c0_13 = arith.constant 0 : index
    %20 = vector.load %arg9[%c56, %c0_13] : memref<216x256xf32, #tpu.memory_space<vmem>>, vector<8x256xf32>
    tpu.vector_store %arg9[%c56, %c0_13], %19 {strides = array<i32>} : memref<216x256xf32, #tpu.memory_space<vmem>>, vector<8x256xf32>,
    %21 = vector.extract_strided_slice %4 {offsets = [0, 22], sizes = [8, 256], strides = [1, 1]} : vector<8x512xf32> to vector<8x256xf32>
    %c64 = arith.constant 64 : index
    %c0_14 = arith.constant 0 : index
    %22 = vector.load %arg9[%c64, %c0_14] : memref<216x256xf32, #tpu.memory_space<vmem>>, vector<8x256xf32>
    tpu.vector_store %arg9[%c64, %c0_14], %21 {strides = array<i32>} : memref<216x256xf32, #tpu.memory_space<vmem>>, vector<8x256xf32>,
    %23 = vector.extract_strided_slice %4 {offsets = [0, 100], sizes = [8, 256], strides = [1, 1]} : vector<8x512xf32> to vector<8x256xf32>
    %c72 = arith.constant 72 : index
    %c0_15 = arith.constant 0 : index
    %24 = vector.load %arg9[%c72, %c0_15] : memref<216x256xf32, #tpu.memory_space<vmem>>, vector<8x256xf32>
    tpu.vector_store %arg9[%c72, %c0_15], %23 {strides = array<i32>} : memref<216x256xf32, #tpu.memory_space<vmem>>, vector<8x256xf32>,
    %25 = vector.extract_strided_slice %4 {offsets = [0, 101], sizes = [8, 256], strides = [1, 1]} : vector<8x512xf32> to vector<8x256xf32>
    %c80 = arith.constant 80 : index
    %c0_16 = arith.constant 0 : index
    %26 = vector.load %arg9[%c80, %c0_16] : memref<216x256xf32, #tpu.memory_space<vmem>>, vector<8x256xf32>
    tpu.vector_store %arg9[%c80, %c0_16], %25 {strides = array<i32>} : memref<216x256xf32, #tpu.memory_space<vmem>>, vector<8x256xf32>,
    %27 = vector.extract_strided_slice %4 {offsets = [0, 102], sizes = [8, 256], strides = [1, 1]} : vector<8x512xf32> to vector<8x256xf32>
    %c88 = arith.constant 88 : index
    %c0_17 = arith.constant 0 : index
    %28 = vector.load %arg9[%c88, %c0_17] : memref<216x256xf32, #tpu.memory_space<vmem>>, vector<8x256xf32>
    tpu.vector_store %arg9[%c88, %c0_17], %27 {strides = array<i32>} : memref<216x256xf32, #tpu.memory_space<vmem>>, vector<8x256xf32>,
    %29 = vector.extract_strided_slice %4 {offsets = [0, 110], sizes = [8, 256], strides = [1, 1]} : vector<8x512xf32> to vector<8x256xf32>
    %c96 = arith.constant 96 : index
    %c0_18 = arith.constant 0 : index
    %30 = vector.load %arg9[%c96, %c0_18] : memref<216x256xf32, #tpu.memory_space<vmem>>, vector<8x256xf32>
    tpu.vector_store %arg9[%c96, %c0_18], %29 {strides = array<i32>} : memref<216x256xf32, #tpu.memory_space<vmem>>, vector<8x256xf32>,
    %31 = vector.extract_strided_slice %4 {offsets = [0, 111], sizes = [8, 256], strides = [1, 1]} : vector<8x512xf32> to vector<8x256xf32>
    %c104 = arith.constant 104 : index
    %c0_19 = arith.constant 0 : index
    %32 = vector.load %arg9[%c104, %c0_19] : memref<216x256xf32, #tpu.memory_space<vmem>>, vector<8x256xf32>
    tpu.vector_store %arg9[%c104, %c0_19], %31 {strides = array<i32>} : memref<216x256xf32, #tpu.memory_space<vmem>>, vector<8x256xf32>,
    %33 = vector.extract_strided_slice %4 {offsets = [0, 112], sizes = [8, 256], strides = [1, 1]} : vector<8x512xf32> to vector<8x256xf32>
    %c112 = arith.constant 112 : index
    %c0_20 = arith.constant 0 : index
    %34 = vector.load %arg9[%c112, %c0_20] : memref<216x256xf32, #tpu.memory_space<vmem>>, vector<8x256xf32>
    tpu.vector_store %arg9[%c112, %c0_20], %33 {strides = array<i32>} : memref<216x256xf32, #tpu.memory_space<vmem>>, vector<8x256xf32>,
    %35 = vector.extract_strided_slice %4 {offsets = [0, 120], sizes = [8, 256], strides = [1, 1]} : vector<8x512xf32> to vector<8x256xf32>
    %c120 = arith.constant 120 : index
    %c0_21 = arith.constant 0 : index
    %36 = vector.load %arg9[%c120, %c0_21] : memref<216x256xf32, #tpu.memory_space<vmem>>, vector<8x256xf32>
    tpu.vector_store %arg9[%c120, %c0_21], %35 {strides = array<i32>} : memref<216x256xf32, #tpu.memory_space<vmem>>, vector<8x256xf32>,
    %37 = vector.extract_strided_slice %4 {offsets = [0, 121], sizes = [8, 256], strides = [1, 1]} : vector<8x512xf32> to vector<8x256xf32>
    %c128 = arith.constant 128 : index
    %c0_22 = arith.constant 0 : index
    %38 = vector.load %arg9[%c128, %c0_22] : memref<216x256xf32, #tpu.memory_space<vmem>>, vector<8x256xf32>
    tpu.vector_store %arg9[%c128, %c0_22], %37 {strides = array<i32>} : memref<216x256xf32, #tpu.memory_space<vmem>>, vector<8x256xf32>,
    %39 = vector.extract_strided_slice %4 {offsets = [0, 122], sizes = [8, 256], strides = [1, 1]} : vector<8x512xf32> to vector<8x256xf32>
    %c136 = arith.constant 136 : index
    %c0_23 = arith.constant 0 : index
    %40 = vector.load %arg9[%c136, %c0_23] : memref<216x256xf32, #tpu.memory_space<vmem>>, vector<8x256xf32>
    tpu.vector_store %arg9[%c136, %c0_23], %39 {strides = array<i32>} : memref<216x256xf32, #tpu.memory_space<vmem>>, vector<8x256xf32>,
    %41 = vector.extract_strided_slice %4 {offsets = [0, 200], sizes = [8, 256], strides = [1, 1]} : vector<8x512xf32> to vector<8x256xf32>
    %c144 = arith.constant 144 : index
    %c0_24 = arith.constant 0 : index
    %42 = vector.load %arg9[%c144, %c0_24] : memref<216x256xf32, #tpu.memory_space<vmem>>, vector<8x256xf32>
    tpu.vector_store %arg9[%c144, %c0_24], %41 {strides = array<i32>} : memref<216x256xf32, #tpu.memory_space<vmem>>, vector<8x256xf32>,
    %43 = vector.extract_strided_slice %4 {offsets = [0, 201], sizes = [8, 256], strides = [1, 1]} : vector<8x512xf32> to vector<8x256xf32>
    %c152 = arith.constant 152 : index
    %c0_25 = arith.constant 0 : index
    %44 = vector.load %arg9[%c152, %c0_25] : memref<216x256xf32, #tpu.memory_space<vmem>>, vector<8x256xf32>
    tpu.vector_store %arg9[%c152, %c0_25], %43 {strides = array<i32>} : memref<216x256xf32, #tpu.memory_space<vmem>>, vector<8x256xf32>,
    %45 = vector.extract_strided_slice %4 {offsets = [0, 202], sizes = [8, 256], strides = [1, 1]} : vector<8x512xf32> to vector<8x256xf32>
    %c160 = arith.constant 160 : index
    %c0_26 = arith.constant 0 : index
    %46 = vector.load %arg9[%c160, %c0_26] : memref<216x256xf32, #tpu.memory_space<vmem>>, vector<8x256xf32>
    tpu.vector_store %arg9[%c160, %c0_26], %45 {strides = array<i32>} : memref<216x256xf32, #tpu.memory_space<vmem>>, vector<8x256xf32>,
    %47 = vector.extract_strided_slice %4 {offsets = [0, 210], sizes = [8, 256], strides = [1, 1]} : vector<8x512xf32> to vector<8x256xf32>
    %c168 = arith.constant 168 : index
    %c0_27 = arith.constant 0 : index
    %48 = vector.load %arg9[%c168, %c0_27] : memref<216x256xf32, #tpu.memory_space<vmem>>, vector<8x256xf32>
    tpu.vector_store %arg9[%c168, %c0_27], %47 {strides = array<i32>} : memref<216x256xf32, #tpu.memory_space<vmem>>, vector<8x256xf32>,
    %49 = vector.extract_strided_slice %4 {offsets = [0, 211], sizes = [8, 256], strides = [1, 1]} : vector<8x512xf32> to vector<8x256xf32>
    %c176 = arith.constant 176 : index
    %c0_28 = arith.constant 0 : index
    %50 = vector.load %arg9[%c176, %c0_28] : memref<216x256xf32, #tpu.memory_space<vmem>>, vector<8x256xf32>
    tpu.vector_store %arg9[%c176, %c0_28], %49 {strides = array<i32>} : memref<216x256xf32, #tpu.memory_space<vmem>>, vector<8x256xf32>,
    %51 = vector.extract_strided_slice %4 {offsets = [0, 212], sizes = [8, 256], strides = [1, 1]} : vector<8x512xf32> to vector<8x256xf32>
    %c184 = arith.constant 184 : index
    %c0_29 = arith.constant 0 : index
    %52 = vector.load %arg9[%c184, %c0_29] : memref<216x256xf32, #tpu.memory_space<vmem>>, vector<8x256xf32>
    tpu.vector_store %arg9[%c184, %c0_29], %51 {strides = array<i32>} : memref<216x256xf32, #tpu.memory_space<vmem>>, vector<8x256xf32>,
    %53 = vector.extract_strided_slice %4 {offsets = [0, 220], sizes = [8, 256], strides = [1, 1]} : vector<8x512xf32> to vector<8x256xf32>
    %c192 = arith.constant 192 : index
    %c0_30 = arith.constant 0 : index
    %54 = vector.load %arg9[%c192, %c0_30] : memref<216x256xf32, #tpu.memory_space<vmem>>, vector<8x256xf32>
    tpu.vector_store %arg9[%c192, %c0_30], %53 {strides = array<i32>} : memref<216x256xf32, #tpu.memory_space<vmem>>, vector<8x256xf32>,
    %55 = vector.extract_strided_slice %4 {offsets = [0, 221], sizes = [8, 256], strides = [1, 1]} : vector<8x512xf32> to vector<8x256xf32>
    %c200 = arith.constant 200 : index
    %c0_31 = arith.constant 0 : index
    %56 = vector.load %arg9[%c200, %c0_31] : memref<216x256xf32, #tpu.memory_space<vmem>>, vector<8x256xf32>
    tpu.vector_store %arg9[%c200, %c0_31], %55 {strides = array<i32>} : memref<216x256xf32, #tpu.memory_space<vmem>>, vector<8x256xf32>,
    %57 = vector.extract_strided_slice %4 {offsets = [0, 222], sizes = [8, 256], strides = [1, 1]} : vector<8x512xf32> to vector<8x256xf32>
    %c208 = arith.constant 208 : index
    %c0_32 = arith.constant 0 : index
    %58 = vector.load %arg9[%c208, %c0_32] : memref<216x256xf32, #tpu.memory_space<vmem>>, vector<8x256xf32>
    tpu.vector_store %arg9[%c208, %c0_32], %57 {strides = array<i32>} : memref<216x256xf32, #tpu.memory_space<vmem>>, vector<8x256xf32>,
    %c0_33 = arith.constant 0 : index
    %c0_34 = arith.constant 0 : index
    %59 = vector.load %arg4[%c0_33, %c0_34] : memref<8x216xf32, #tpu.memory_space<vmem>>, vector<8x216xf32>
    %c0_35 = arith.constant 0 : index
    %c0_36 = arith.constant 0 : index
    %60 = vector.load %arg9[%c0_35, %c0_36] : memref<216x256xf32, #tpu.memory_space<vmem>>, vector<216x256xf32>
    %cst = arith.constant dense<0.000000e+00> : vector<8x256xf32>
    %61 = tpu.matmul %59, %60, %cst {dimension_numbers = #tpu.dot_dimension_numbers<[1], [0], [0], [1], [0, 0, 1, 1], [], []>} : vector<8x216xf32>, vector<216x256xf32>, vector<8x256xf32> -> vector<8x256xf32>
    %c0_37 = arith.constant 0 : index
    %c0_38 = arith.constant 0 : index
    %62 = vector.load %arg5[%c0_37, %c0_38] : memref<1x256xf32, #tpu.memory_space<vmem>>, vector<1x256xf32>
    %63 = vector.broadcast %62 : vector<1x256xf32> to vector<8x256xf32>
    %64 = arith.mulf %61, %63 : vector<8x256xf32>
    %c0_39 = arith.constant 0 : index
    %c0_40 = arith.constant 0 : index
    %c0_41 = arith.constant 0 : index
    %65 = vector.load %arg6[%c0_39, %c0_40, %c0_41] : memref<1x8x256xf32, #tpu.memory_space<vmem>>, vector<1x8x256xf32>
    %66 = vector.shape_cast %65 : vector<1x8x256xf32> to vector<8x256xf32>
    %67 = vector.shape_cast %64 : vector<8x256xf32> to vector<1x8x256xf32>
    tpu.vector_store %arg6[%c0_39, %c0_40, %c0_41], %67 {strides = array<i32>} : memref<1x8x256xf32, #tpu.memory_space<vmem>>, vector<1x8x256xf32>,
    %cst_42 = arith.constant dense<0.000000e+00> : vector<8xf32>
    %68 = vector.multi_reduction <add>, %64, %cst_42 [1] : vector<8x256xf32> to vector<8xf32>
    %69 = vector.shape_cast %68 : vector<8xf32> to vector<8x1xf32>
    %c0_43 = arith.constant 0 : index
    %c0_44 = arith.constant 0 : index
    %c0_45 = arith.constant 0 : index
    %c0_46 = arith.constant 0 : index
    %70 = vector.load %arg7[%c0_43, %c0_44, %c0_45, %c0_46] : memref<1x1x8x1xf32, #tpu.memory_space<vmem>>, vector<1x1x8x1xf32>
    %71 = vector.shape_cast %70 : vector<1x1x8x1xf32> to vector<8x1xf32>
    %72 = vector.shape_cast %69 : vector<8x1xf32> to vector<1x1x8x1xf32>
    tpu.vector_store %arg7[%c0_43, %c0_44, %c0_45, %c0_46], %72 {strides = array<i32>} : memref<1x1x8x1xf32, #tpu.memory_space<vmem>>, vector<1x1x8x1xf32>,
    %73 = arith.mulf %64, %64 : vector<8x256xf32>
    %cst_47 = arith.constant dense<0.000000e+00> : vector<8xf32>
    %74 = vector.multi_reduction <add>, %73, %cst_47 [1] : vector<8x256xf32> to vector<8xf32>
    %75 = vector.shape_cast %74 : vector<8xf32> to vector<8x1xf32>
    %c0_48 = arith.constant 0 : index
    %c0_49 = arith.constant 0 : index
    %c0_50 = arith.constant 0 : index
    %c0_51 = arith.constant 0 : index
    %76 = vector.load %arg8[%c0_48, %c0_49, %c0_50, %c0_51] : memref<1x1x8x1xf32, #tpu.memory_space<vmem>>, vector<1x1x8x1xf32>
    %77 = vector.shape_cast %76 : vector<1x1x8x1xf32> to vector<8x1xf32>
    %78 = vector.shape_cast %75 : vector<8x1xf32> to vector<1x1x8x1xf32>
    tpu.vector_store %arg8[%c0_48, %c0_49, %c0_50, %c0_51], %78 {strides = array<i32>} : memref<1x1x8x1xf32, #tpu.memory_space<vmem>>, vector<1x1x8x1xf32>,
    return
  }
  func.func @transform_0(%arg0: i32, %arg1: i32) -> (i32, i32, i32) {
    %c0_i32 = arith.constant 0 : i32
    %c0_i32_0 = arith.constant 0 : i32
    return %arg0, %c0_i32, %arg1 : i32, i32, i32
  }
  func.func @transform_1(%arg0: i32, %arg1: i32) -> (i32, i32, i32) {
    %c1_i32 = arith.constant 1 : i32
    %0 = arith.addi %arg1, %c1_i32 : i32
    %c0_i32 = arith.constant 0 : i32
    %c0_i32_0 = arith.constant 0 : i32
    return %arg0, %c0_i32, %0 : i32, i32, i32
  }
  func.func @transform_2(%arg0: i32, %arg1: i32) -> (i32, i32) {
    %c0_i32 = arith.constant 0 : i32
    %c0_i32_0 = arith.constant 0 : i32
    %c0_i32_1 = arith.constant 0 : i32
    return %c0_i32, %c0_i32_0 : i32, i32
  }
  func.func @transform_3(%arg0: i32, %arg1: i32) -> (i32, i32) {
    %c0_i32 = arith.constant 0 : i32
    %c0_i32_0 = arith.constant 0 : i32
    return %c0_i32, %arg1 : i32, i32
  }
  func.func @transform_4(%arg0: i32, %arg1: i32) -> (i32, i32, i32) {
    %c0_i32 = arith.constant 0 : i32
    %c0_i32_0 = arith.constant 0 : i32
    return %arg0, %c0_i32, %arg1 : i32, i32, i32
  }
  func.func @transform_5(%arg0: i32, %arg1: i32) -> (i32, i32, i32, i32) {
    %c0_i32 = arith.constant 0 : i32
    %c0_i32_0 = arith.constant 0 : i32
    %c0_i32_1 = arith.constant 0 : i32
    return %arg0, %arg1, %c0_i32, %c0_i32_0 : i32, i32, i32, i32
  }
  func.func @transform_6(%arg0: i32, %arg1: i32) -> (i32, i32, i32, i32) {
    %c0_i32 = arith.constant 0 : i32
    %c0_i32_0 = arith.constant 0 : i32
    %c0_i32_1 = arith.constant 0 : i32
    return %arg0, %arg1, %c0_i32, %c0_i32_0 : i32, i32, i32, i32
  }
}

module attributes {stable_mosaic.version = 11 : i64} {
  func.func @kernel(%arg0: i32, %arg1: i32, %arg2: memref<1x8x256xf32, #tpu.memory_space<vmem>>, %arg3: memref<8x1xf32, #tpu.memory_space<vmem>>, %arg4: memref<8x1xf32, #tpu.memory_space<vmem>>, %arg5: memref<1x256xf32, #tpu.memory_space<vmem>>, %arg6: memref<1x8x256xf32, #tpu.memory_space<vmem>>) attributes {dimension_semantics = [#tpu.dimension_semantics<parallel>, #tpu.dimension_semantics<parallel>], iteration_bounds = array<i64: 2, 4>, scalar_prefetch = 0 : i64, scratch_operands = 0 : i64, tpu.core_type = #tpu.core_type<tc>, window_params = [{transform_indices = @transform_0, window_bounds = array<i64: 1, 8, 256>}, {pipeline_mode = #tpu.pipeline_mode<synchronous>, transform_indices = @transform_1, window_bounds = array<i64: 8, 1>}, {pipeline_mode = #tpu.pipeline_mode<synchronous>, transform_indices = @transform_2, window_bounds = array<i64: 8, 1>}, {transform_indices = @transform_3, window_bounds = array<i64: 1, 256>}, {transform_indices = @transform_4, window_bounds = array<i64: 1, 8, 256>}]} {
    %c0 = arith.constant 0 : index
    %c0_0 = arith.constant 0 : index
    %c0_1 = arith.constant 0 : index
    %0 = vector.load %arg2[%c0, %c0_0, %c0_1] : memref<1x8x256xf32, #tpu.memory_space<vmem>>, vector<1x8x256xf32>
    %1 = vector.shape_cast %0 : vector<1x8x256xf32> to vector<8x256xf32>
    %c0_2 = arith.constant 0 : index
    %c0_3 = arith.constant 0 : index
    %2 = vector.load %arg3[%c0_2, %c0_3] : memref<8x1xf32, #tpu.memory_space<vmem>>, vector<8x1xf32>
    %3 = vector.broadcast %2 : vector<8x1xf32> to vector<8x256xf32>
    %4 = arith.mulf %1, %3 : vector<8x256xf32>
    %c0_4 = arith.constant 0 : index
    %c0_5 = arith.constant 0 : index
    %5 = vector.load %arg4[%c0_4, %c0_5] : memref<8x1xf32, #tpu.memory_space<vmem>>, vector<8x1xf32>
    %6 = vector.broadcast %5 : vector<8x1xf32> to vector<8x256xf32>
    %7 = arith.addf %4, %6 : vector<8x256xf32>
    %cst = arith.constant 0.000000e+00 : f32
    %8 = vector.broadcast %cst : f32 to vector<8x256xf32>
    %9 = arith.maximumf %7, %8 : vector<8x256xf32>
    %c0_6 = arith.constant 0 : index
    %c0_7 = arith.constant 0 : index
    %10 = vector.load %arg5[%c0_6, %c0_7] : memref<1x256xf32, #tpu.memory_space<vmem>>, vector<1x256xf32>
    %11 = vector.broadcast %10 : vector<1x256xf32> to vector<8x256xf32>
    %12 = arith.mulf %9, %11 : vector<8x256xf32>
    %c0_8 = arith.constant 0 : index
    %c0_9 = arith.constant 0 : index
    %c0_10 = arith.constant 0 : index
    %13 = vector.load %arg6[%c0_8, %c0_9, %c0_10] : memref<1x8x256xf32, #tpu.memory_space<vmem>>, vector<1x8x256xf32>
    %14 = vector.shape_cast %13 : vector<1x8x256xf32> to vector<8x256xf32>
    %15 = vector.shape_cast %12 : vector<8x256xf32> to vector<1x8x256xf32>
    tpu.vector_store %arg6[%c0_8, %c0_9, %c0_10], %15 {strides = array<i32>} : memref<1x8x256xf32, #tpu.memory_space<vmem>>, vector<1x8x256xf32>,
    return
  }
  func.func @transform_0(%arg0: i32, %arg1: i32) -> (i32, i32, i32) {
    %c0_i32 = arith.constant 0 : i32
    %c0_i32_0 = arith.constant 0 : i32
    return %arg0, %c0_i32, %arg1 : i32, i32, i32
  }
  func.func @transform_1(%arg0: i32, %arg1: i32) -> (i32, i32) {
    %c0_i32 = arith.constant 0 : i32
    %c0_i32_0 = arith.constant 0 : i32
    %c0_i32_1 = arith.constant 0 : i32
    return %c0_i32, %c0_i32_0 : i32, i32
  }
  func.func @transform_2(%arg0: i32, %arg1: i32) -> (i32, i32) {
    %c0_i32 = arith.constant 0 : i32
    %c0_i32_0 = arith.constant 0 : i32
    %c0_i32_1 = arith.constant 0 : i32
    return %c0_i32, %c0_i32_0 : i32, i32
  }
  func.func @transform_3(%arg0: i32, %arg1: i32) -> (i32, i32) {
    %c0_i32 = arith.constant 0 : i32
    %c0_i32_0 = arith.constant 0 : i32
    return %c0_i32, %arg1 : i32, i32
  }
  func.func @transform_4(%arg0: i32, %arg1: i32) -> (i32, i32, i32) {
    %c0_i32 = arith.constant 0 : i32
    %c0_i32_0 = arith.constant 0 : i32
    return %arg0, %c0_i32, %arg1 : i32, i32, i32
  }
}

module attributes {stable_mosaic.version = 11 : i64} {
  func.func @kernel(%arg0: i32, %arg1: i32, %arg2: memref<1x8x256xf32, #tpu.memory_space<vmem>>, %arg3: memref<8x1xf32, #tpu.memory_space<vmem>>, %arg4: memref<8x1xf32, #tpu.memory_space<vmem>>, %arg5: memref<1x256xf32, #tpu.memory_space<vmem>>, %arg6: memref<1x8x256xf32, #tpu.memory_space<vmem>>, %arg7: memref<1x8x256xf32, #tpu.memory_space<vmem>>) attributes {dimension_semantics = [#tpu.dimension_semantics<parallel>, #tpu.dimension_semantics<parallel>], iteration_bounds = array<i64: 2, 4>, scalar_prefetch = 0 : i64, scratch_operands = 0 : i64, tpu.core_type = #tpu.core_type<tc>, window_params = [{transform_indices = @transform_0, window_bounds = array<i64: 1, 8, 256>}, {pipeline_mode = #tpu.pipeline_mode<synchronous>, transform_indices = @transform_1, window_bounds = array<i64: 8, 1>}, {pipeline_mode = #tpu.pipeline_mode<synchronous>, transform_indices = @transform_2, window_bounds = array<i64: 8, 1>}, {transform_indices = @transform_3, window_bounds = array<i64: 1, 256>}, {transform_indices = @transform_4, window_bounds = array<i64: 1, 8, 256>}, {transform_indices = @transform_5, window_bounds = array<i64: 1, 8, 256>}]} {
    %c0 = arith.constant 0 : index
    %c0_0 = arith.constant 0 : index
    %c0_1 = arith.constant 0 : index
    %0 = vector.load %arg2[%c0, %c0_0, %c0_1] : memref<1x8x256xf32, #tpu.memory_space<vmem>>, vector<1x8x256xf32>
    %1 = vector.shape_cast %0 : vector<1x8x256xf32> to vector<8x256xf32>
    %c0_2 = arith.constant 0 : index
    %c0_3 = arith.constant 0 : index
    %2 = vector.load %arg3[%c0_2, %c0_3] : memref<8x1xf32, #tpu.memory_space<vmem>>, vector<8x1xf32>
    %3 = vector.broadcast %2 : vector<8x1xf32> to vector<8x256xf32>
    %4 = arith.mulf %1, %3 : vector<8x256xf32>
    %c0_4 = arith.constant 0 : index
    %c0_5 = arith.constant 0 : index
    %5 = vector.load %arg4[%c0_4, %c0_5] : memref<8x1xf32, #tpu.memory_space<vmem>>, vector<8x1xf32>
    %6 = vector.broadcast %5 : vector<8x1xf32> to vector<8x256xf32>
    %7 = arith.addf %4, %6 : vector<8x256xf32>
    %c0_6 = arith.constant 0 : index
    %c0_7 = arith.constant 0 : index
    %c0_8 = arith.constant 0 : index
    %8 = vector.load %arg6[%c0_6, %c0_7, %c0_8] : memref<1x8x256xf32, #tpu.memory_space<vmem>>, vector<1x8x256xf32>
    %9 = vector.shape_cast %8 : vector<1x8x256xf32> to vector<8x256xf32>
    %10 = arith.addf %7, %9 : vector<8x256xf32>
    %cst = arith.constant 0.000000e+00 : f32
    %11 = vector.broadcast %cst : f32 to vector<8x256xf32>
    %12 = arith.maximumf %10, %11 : vector<8x256xf32>
    %c0_9 = arith.constant 0 : index
    %c0_10 = arith.constant 0 : index
    %13 = vector.load %arg5[%c0_9, %c0_10] : memref<1x256xf32, #tpu.memory_space<vmem>>, vector<1x256xf32>
    %14 = vector.broadcast %13 : vector<1x256xf32> to vector<8x256xf32>
    %15 = arith.mulf %12, %14 : vector<8x256xf32>
    %c0_11 = arith.constant 0 : index
    %c0_12 = arith.constant 0 : index
    %c0_13 = arith.constant 0 : index
    %16 = vector.load %arg7[%c0_11, %c0_12, %c0_13] : memref<1x8x256xf32, #tpu.memory_space<vmem>>, vector<1x8x256xf32>
    %17 = vector.shape_cast %16 : vector<1x8x256xf32> to vector<8x256xf32>
    %18 = vector.shape_cast %15 : vector<8x256xf32> to vector<1x8x256xf32>
    tpu.vector_store %arg7[%c0_11, %c0_12, %c0_13], %18 {strides = array<i32>} : memref<1x8x256xf32, #tpu.memory_space<vmem>>, vector<1x8x256xf32>,
    return
  }
  func.func @transform_0(%arg0: i32, %arg1: i32) -> (i32, i32, i32) {
    %c0_i32 = arith.constant 0 : i32
    %c0_i32_0 = arith.constant 0 : i32
    return %arg0, %c0_i32, %arg1 : i32, i32, i32
  }
  func.func @transform_1(%arg0: i32, %arg1: i32) -> (i32, i32) {
    %c0_i32 = arith.constant 0 : i32
    %c0_i32_0 = arith.constant 0 : i32
    %c0_i32_1 = arith.constant 0 : i32
    return %c0_i32, %c0_i32_0 : i32, i32
  }
  func.func @transform_2(%arg0: i32, %arg1: i32) -> (i32, i32) {
    %c0_i32 = arith.constant 0 : i32
    %c0_i32_0 = arith.constant 0 : i32
    %c0_i32_1 = arith.constant 0 : i32
    return %c0_i32, %c0_i32_0 : i32, i32
  }
  func.func @transform_3(%arg0: i32, %arg1: i32) -> (i32, i32) {
    %c0_i32 = arith.constant 0 : i32
    %c0_i32_0 = arith.constant 0 : i32
    return %c0_i32, %arg1 : i32, i32
  }
  func.func @transform_4(%arg0: i32, %arg1: i32) -> (i32, i32, i32) {
    %c0_i32 = arith.constant 0 : i32
    %c0_i32_0 = arith.constant 0 : i32
    return %arg0, %c0_i32, %arg1 : i32, i32, i32
  }
  func.func @transform_5(%arg0: i32, %arg1: i32) -> (i32, i32, i32) {
    %c0_i32 = arith.constant 0 : i32
    %c0_i32_0 = arith.constant 0 : i32
    return %arg0, %c0_i32, %arg1 : i32, i32, i32
  }
}

</mosaic_0001>

<llo_original>
// kernel: basic_block_3d.5
$region0: #{basic_block_3d.5}
  #allocation0 [shape = 'u32[]', space=smem, size = 0x4, offset = 0x4, fixed_abs, tag = 'smem constant byte address 0x4 - core index']
  #allocation1 [shape = 'u32[72,128]{1,0:T(1,128)}', space=vmem, size = 0x9000, scoped, tag = 'internal scratch']
  %s0 = inlined_call_operand.vmem [shape: f32[2,8,1024], index: 0, kind: input, shape index: {}]
  %s1 = inlined_call_operand.vmem [shape: f32[8,1], index: 1, kind: input, shape index: {}]
  %s2 = inlined_call_operand.vmem [shape: f32[8,1], index: 2, kind: input, shape index: {}]
  %s3 = inlined_call_operand.vmem [shape: f32[1,1024], index: 3, kind: input, shape index: {}]
  %s4 = inlined_call_operand.vmem [shape: f32[2,8,1024], index: 4, kind: output, shape index: {}]
  %s5 = sld [smem:[#allocation0]]
  $region49: #{basic_block_3d.5} parent=0
    _
  %s7 = ssub.s32 1, %s5
  %s8 = scalar_select 0, %s7, %s5
  loop: start=0, step=1, limit=10
  $region2: #{basic_block_3d.5} parent=0 // loop_pre_header
    _
  $region3: #{basic_block_3d.5} parent=0 // loop_header
    %s10 = sphi 0, %s14
    %p11 = scmp.ge.s32.totalorder %s10, 10
    %s17 = sphi 0, %s29
    %s18 = sphi 0, %s25
    %s19 = sphi 0, %s17
    %s20 = sphi 0, %s18
    %s21 = sphi 0, %s19
    %s22 = sphi 0, %s20
    %s34 = sphi 0, %s36
    %s37 = sphi 0, %s34
    %s38 = sphi 0, %s37
    %s54 = sphi 0, %s38
    %s58 = sphi 0, %s58
    %s60 = sphi 0, %s58
    %s61 = sphi 0, %s60
    %s75 = sphi 0, %s61
    %s79 = sphi 0, %s79
    %s81 = sphi 0, %s79
    %s82 = sphi 0, %s81
    %s96 = sphi 0, %s82
    %s102 = sphi 0, %s104
    %s105 = sphi 0, %s102
    %s106 = sphi 0, %s105
    %s122 = sphi 0, %s106
    %s130 = sphi 0, %s132
    %s133 = sphi 0, %s130
    %s134 = sphi 0, %s133
    %s150 = sphi 0, %s134
  $region4: #{basic_block_3d.5} parent=0 // loop_header_branch
    %13 = sbr.rel (%p11) target = $region8
  $region5: #{basic_block_3d.5} parent=0 // loop_body
    %s15 = ssub.s32 %s10, 1
    %s16 = ssub.s32 %s10, 2
    %s23 = sadd.s32 1, %s18
    %p24 = scmp.ge.s32.totalorder %s23, 4
    %s25 = scalar_select %p24, 0, %s23
    %s26 = sadd.s32 1, %s17
    %s27 = scalar_select %p24, %s26, %s17
    %p28 = scmp.ge.s32.totalorder %s27, 2
    %s29 = scalar_select %p28, 0, %s27
    %s30 = ssub.s32 %s17, %s29
    %s31 = ssub.s32 %s18, %s25
    %s32 = sor.u32 %s30, %s31
    %p33 = scmp.eq.s32.totalorder %s32, 0
    %s35 = sadd.s32 %s34, 1
    %s36 = scalar_select %p33, %s34, %s35
    %p39 = pneg %p33
    %p40 = scmp.eq.s32.totalorder %s10, 7
    %p41 = por %p39, %p40
    %p42 = scmp.ne.s32.totalorder %s34, %s37
    %p43 = scmp.eq.s32.totalorder %s10, 0
    %p44 = por %p42, %p43
    %p45 = scmp.ne.s32.totalorder %s34, %s37
    %p46 = scmp.eq.s32.totalorder %s15, 7
    %p47 = por %p45, %p46
    %p48 = scmp.ne.s32.totalorder %s37, %s38
    %p49 = scmp.eq.s32.totalorder %s15, 0
    %p50 = por %p48, %p49
    %p51 = scmp.ne.s32.totalorder %s37, %s38
    %p52 = scmp.eq.s32.totalorder %s16, 7
    %p53 = por %p51, %p52
    %p55 = scmp.ne.s32.totalorder %s38, %s54
    %p56 = scmp.eq.s32.totalorder %s16, 0
    %p57 = por %p55, %p56
    %s59 = sadd.s32 %s58, 1
    %p62 = scmp.eq.s32.totalorder %s10, 7
    %p63 = scmp.ne.s32.totalorder %s58, %s60
    %p64 = scmp.eq.s32.totalorder %s10, 0
    %p65 = por %p63, %p64
    %p66 = scmp.ne.s32.totalorder %s58, %s60
    %p67 = scmp.eq.s32.totalorder %s15, 7
    %p68 = por %p66, %p67
    %p69 = scmp.ne.s32.totalorder %s60, %s61
    %p70 = scmp.eq.s32.totalorder %s15, 0
    %p71 = por %p69, %p70
    %p72 = scmp.ne.s32.totalorder %s60, %s61
    %p73 = scmp.eq.s32.totalorder %s16, 7
    %p74 = por %p72, %p73
    %p76 = scmp.ne.s32.totalorder %s61, %s75
    %p77 = scmp.eq.s32.totalorder %s16, 0
    %p78 = por %p76, %p77
    %s80 = sadd.s32 %s79, 1
    %p83 = scmp.eq.s32.totalorder %s10, 7
    %p84 = scmp.ne.s32.totalorder %s79, %s81
    %p85 = scmp.eq.s32.totalorder %s10, 0
    %p86 = por %p84, %p85
    %p87 = scmp.ne.s32.totalorder %s79, %s81
    %p88 = scmp.eq.s32.totalorder %s15, 7
    %p89 = por %p87, %p88
    %p90 = scmp.ne.s32.totalorder %s81, %s82
    %p91 = scmp.eq.s32.totalorder %s15, 0
    %p92 = por %p90, %p91
    %p93 = scmp.ne.s32.totalorder %s81, %s82
    %p94 = scmp.eq.s32.totalorder %s16, 7
    %p95 = por %p93, %p94
    %p97 = scmp.ne.s32.totalorder %s82, %s96
    %p98 = scmp.eq.s32.totalorder %s16, 0
    %p99 = por %p97, %p98
    %s100 = ssub.s32 %s18, %s25
    %p101 = scmp.eq.s32.totalorder %s100, 0
    %s103 = sadd.s32 %s102, 1
    %s104 = scalar_select %p101, %s102, %s103
    %p107 = pneg %p101
    %p108 = scmp.eq.s32.totalorder %s10, 7
    %p109 = por %p107, %p108
    %p110 = scmp.ne.s32.totalorder %s102, %s105
    %p111 = scmp.eq.s32.totalorder %s10, 0
    %p112 = por %p110, %p111
    %p113 = scmp.ne.s32.totalorder %s102, %s105
    %p114 = scmp.eq.s32.totalorder %s15, 7
    %p115 = por %p113, %p114
    %p116 = scmp.ne.s32.totalorder %s105, %s106
    %p117 = scmp.eq.s32.totalorder %s15, 0
    %p118 = por %p116, %p117
    %p119 = scmp.ne.s32.totalorder %s105, %s106
    %p120 = scmp.eq.s32.totalorder %s16, 7
    %p121 = por %p119, %p120
    %p123 = scmp.ne.s32.totalorder %s106, %s122
    %p124 = scmp.eq.s32.totalorder %s16, 0
    %p125 = por %p123, %p124
    %s126 = ssub.s32 %s17, %s29
    %s127 = ssub.s32 %s18, %s25
    %s128 = sor.u32 %s126, %s127
    %p129 = scmp.eq.s32.totalorder %s128, 0
    %s131 = sadd.s32 %s130, 1
    %s132 = scalar_select %p129, %s130, %s131
    %p135 = pneg %p129
    %p136 = scmp.eq.s32.totalorder %s10, 7
    %p137 = por %p135, %p136
    %p138 = scmp.ne.s32.totalorder %s130, %s133
    %p139 = scmp.eq.s32.totalorder %s10, 0
    %p140 = por %p138, %p139
    %p141 = scmp.ne.s32.totalorder %s130, %s133
    %p142 = scmp.eq.s32.totalorder %s15, 7
    %p143 = por %p141, %p142
    %p144 = scmp.ne.s32.totalorder %s133, %s134
    %p145 = scmp.eq.s32.totalorder %s15, 0
    %p146 = por %p144, %p145
    %p147 = scmp.ne.s32.totalorder %s133, %s134
    %p148 = scmp.eq.s32.totalorder %s16, 7
    %p149 = por %p147, %p148
    %p151 = scmp.ne.s32.totalorder %s134, %s150
    %p152 = scmp.eq.s32.totalorder %s16, 0
    %p153 = por %p151, %p152
    %p154 = scmp.le.s32.totalorder 1, %s10
    %p155 = scmp.lt.s32.totalorder %s10, 9
    %p156 = pnand %p154, %p155
    %p157 = pneg %p156
    // Predicated region
    $region9: #{basic_block_3d.5} parent=5 // pred_check
      _
    $region10: #{basic_block_3d.5} parent=5 // pred_check_branch
      %159 = sbr.rel (%p156) target = $region12
    $region11: #{basic_block_3d.5} parent=5 // pred_region
      %s160 = ssub.s32 %s10, 1
      // Predicated region
      $region13: #{basic_block_3d.5} parent=11 // pred_check
        %p161 = pneg %p71
      $region14: #{basic_block_3d.5} parent=11 // pred_check_branch
        %163 = sbr.rel (%p161) target = $region16
      $region15: #{basic_block_3d.5} parent=11 // pred_region
        _
      $region16: #{basic_block_3d.5} parent=11 // pred_fallthru
        _
      // Predicated region
      $region17: #{basic_block_3d.5} parent=11 // pred_check
        %p164 = pneg %p92
      $region18: #{basic_block_3d.5} parent=11 // pred_check_branch
        %166 = sbr.rel (%p164) target = $region20
      $region19: #{basic_block_3d.5} parent=11 // pred_region
        _
      $region20: #{basic_block_3d.5} parent=11 // pred_fallthru
        _
    $region12: #{basic_block_3d.5} parent=5 // pred_fallthru
      _
    %p167 = scmp.lt.s32.totalorder %s10, 8
    // Predicated region
    $region21: #{basic_block_3d.5} parent=5 // pred_check
      %p168 = pneg %p167
    $region22: #{basic_block_3d.5} parent=5 // pred_check_branch
      %170 = sbr.rel (%p168) target = $region24
    $region23: #{basic_block_3d.5} parent=5 // pred_region
      // Predicated region
      $region25: #{basic_block_3d.5} parent=23 // pred_check
        %p171 = pneg %p44
      $region26: #{basic_block_3d.5} parent=23 // pred_check_branch
        %173 = sbr.rel (%p171) target = $region28
      $region27: #{basic_block_3d.5} parent=23 // pred_region
        %s174 = smul.u32 2, %s18
        %p175 = scmp.lt.s32.totalorder %s17, 1
        %s176 = scalar_select %p175, %s17, 1
        %p177 = scmp.lt.s32.totalorder %s174, 7
        %s178 = scalar_select %p177, %s174, 7
        %s179 = smul.addr %s176, 8
        %s180 = sadd.s32 %s178, %s179
        %s181 = smul.addr %s180, 8
        %s182 = scalar_lea.vmem %s0, %s181
        %s183 = smul.u32 2, %s18
      $region28: #{basic_block_3d.5} parent=23 // pred_fallthru
        _
      // Predicated region
      $region29: #{basic_block_3d.5} parent=23 // pred_check
        %p184 = pneg %p112
      $region30: #{basic_block_3d.5} parent=23 // pred_check_branch
        %186 = sbr.rel (%p184) target = $region32
      $region31: #{basic_block_3d.5} parent=23 // pred_region
        %s187 = smul.u32 2, %s18
        %p188 = scmp.lt.s32.totalorder %s187, 7
        %s189 = scalar_select %p188, %s187, 7
        %s190 = scalar_lea.vmem %s3, %s189
        %s191 = smul.u32 2, %s18
      $region32: #{basic_block_3d.5} parent=23 // pred_fallthru
        _
    $region24: #{basic_block_3d.5} parent=5 // pred_fallthru
      _
    %p192 = scmp.le.s32.totalorder 1, %s10
    %p193 = scmp.lt.s32.totalorder %s10, 9
    %p194 = pnand %p192, %p193
    %p195 = pneg %p194
    // Predicated region
    $region33: #{basic_block_3d.5} parent=5 // pred_check
      _
    $region34: #{basic_block_3d.5} parent=5 // pred_check_branch
      %197 = sbr.rel (%p194) target = $region36
    $region35: #{basic_block_3d.5} parent=5 // pred_region
      %s198 = ssub.s32 %s10, 1
      %s199 = smul.u32 2, %s20
      %p200 = scmp.lt.s32.totalorder %s19, 1
      %s201 = scalar_select %p200, %s19, 1
      %p202 = scmp.lt.s32.totalorder %s199, 7
      %s203 = scalar_select %p202, %s199, 7
      %s204 = smul.addr %s201, 8
      %s205 = sadd.s32 %s203, %s204
      %s206 = smul.addr %s205, 8
      %s207 = scalar_lea.vmem %s0, %s206
      %p208 = pneg %p50
      %p209 = pneg %p47
      %p210 = pneg %p71
      %p211 = pneg %p68
      %p212 = pneg %p92
      %p213 = pneg %p89
      %s214 = smul.u32 2, %s20
      %p215 = scmp.lt.s32.totalorder %s214, 7
      %s216 = scalar_select %p215, %s214, 7
      %s217 = scalar_lea.vmem %s3, %s216
      %p218 = pneg %p118
      %p219 = pneg %p115
      %p220 = pneg %p146
      %p221 = pneg %p143
      %s222 = smul.u32 2, %s20
      %p223 = scmp.lt.s32.totalorder %s19, 1
      %s224 = scalar_select %p223, %s19, 1
      %p225 = scmp.lt.s32.totalorder %s222, 7
      %s226 = scalar_select %p225, %s222, 7
      %s227 = smul.addr %s224, 8
      %s228 = sadd.s32 %s226, %s227
      %s229 = smul.addr %s228, 8
      %s230 = scalar_lea.vmem %s4, %s229
      %s231 = smul.u32 2, %s20
      %p232 = scmp.lt.s32.totalorder %s19, 1
      %s233 = scalar_select %p232, %s19, 1
      %p234 = scmp.lt.s32.totalorder %s231, 7
      %s235 = scalar_select %p234, %s231, 7
      %s236 = smul.addr %s233, 8
      %s237 = sadd.s32 %s235, %s236
      %s238 = smul.addr %s237, 8
      %s239 = scalar_lea.vmem %s0, %s238
      %s240 = smul.u32 2, %s20
      %s241 = smul.u32 2, %s20
      %p242 = scmp.lt.s32.totalorder %s241, 7
      %s243 = scalar_select %p242, %s241, 7
      %s244 = scalar_lea.vmem %s3, %s243
      %s245 = smul.u32 2, %s20
      %s246 = smul.u32 2, %s20
      %p247 = scmp.lt.s32.totalorder %s19, 1
      %s248 = scalar_select %p247, %s19, 1
      %p249 = scmp.lt.s32.totalorder %s246, 7
      %s250 = scalar_select %p249, %s246, 7
      %s251 = smul.addr %s248, 8
      %s252 = sadd.s32 %s250, %s251
      %s253 = smul.addr %s252, 8
      %s254 = scalar_lea.vmem %s4, %s253
      %s255 = smul.u32 2, %s20
      %v256 = vld [vmem:[%s239] sm:$0xff]
      %v257 = vld [vmem:[%s239 + $0x8] sm:$0xff]
      %v258 = vld [vmem:[%s1] sm:$0xff]
      %260 = vset.pattern.permute.xlu0 0
      %261 = vperm.xlu0 %260, %v258
      %v262 = vpop.permute.xlu0 %261
      %v264 = vmul.f32 %v256, %v262
      %v265 = vmul.f32 %v257, %v262
      %v266 = vld [vmem:[%s2] sm:$0xff]
      %268 = vset.pattern.permute.xlu0 0
      %269 = vperm.xlu0 %268, %v266
      %v270 = vpop.permute.xlu0 %269
      %v272 = vadd.f32 %v264, %v270
      %v273 = vadd.f32 %v265, %v270
      %v274 = vmax.f32 %v272, 0.0
      %v275 = vmax.f32 %v273, 0.0
      %v276 = vld [vmem:[%s244] sm:$0x3]
      %v278 = vperm.slane %v276, 0
      %v279 = vperm.slane %v276, 1
      %v282 = vmul.f32 %v274, %v278
      %v283 = vmul.f32 %v275, %v279
      %284 = vst [vmem:[%s254] sm:$0xff] %v282
      %285 = vst [vmem:[%s254 + $0x8] sm:$0xff] %v283
      %s286 = smul.u32 2, %s20
      %p287 = scmp.lt.s32.totalorder %s19, 1
      %s288 = scalar_select %p287, %s19, 1
      %p289 = scmp.lt.s32.totalorder %s286, 7
      %s290 = scalar_select %p289, %s286, 7
      %s291 = smul.addr %s288, 8
      %s292 = sadd.s32 %s290, %s291
      %s293 = smul.addr %s292, 8
      %s294 = scalar_lea.vmem %s4, %s293
      // Predicated region
      $region37: #{basic_block_3d.5} parent=35 // pred_check
        %p295 = pneg %p143
      $region38: #{basic_block_3d.5} parent=35 // pred_check_branch
        %297 = sbr.rel (%p295) target = $region40
      $region39: #{basic_block_3d.5} parent=35 // pred_region
        %s298 = smul.u32 2, %s20
      $region40: #{basic_block_3d.5} parent=35 // pred_fallthru
        _
    $region36: #{basic_block_3d.5} parent=5 // pred_fallthru
      _
    %p299 = scmp.le.s32.totalorder 2, %s10
    // Predicated region
    $region41: #{basic_block_3d.5} parent=5 // pred_check
      %p300 = pneg %p299
    $region42: #{basic_block_3d.5} parent=5 // pred_check_branch
      %302 = sbr.rel (%p300) target = $region44
    $region43: #{basic_block_3d.5} parent=5 // pred_region
      %s303 = ssub.s32 %s10, 2
      // Predicated region
      $region45: #{basic_block_3d.5} parent=43 // pred_check
        %p304 = pneg %p149
      $region46: #{basic_block_3d.5} parent=43 // pred_check_branch
        %306 = sbr.rel (%p304) target = $region48
      $region47: #{basic_block_3d.5} parent=43 // pred_region
        %s307 = smul.u32 2, %s22
        %p308 = scmp.lt.s32.totalorder %s21, 1
        %s309 = scalar_select %p308, %s21, 1
        %p310 = scmp.lt.s32.totalorder %s307, 7
        %s311 = scalar_select %p310, %s307, 7
        %s312 = smul.addr %s309, 8
        %s313 = sadd.s32 %s311, %s312
        %s314 = smul.addr %s313, 8
        %s315 = scalar_lea.vmem %s4, %s314
      $region48: #{basic_block_3d.5} parent=43 // pred_fallthru
        _
    $region44: #{basic_block_3d.5} parent=5 // pred_fallthru
      _
  $region6: #{basic_block_3d.5} parent=0 // loop_footer
    %s14 = sadd.s32 1, %s10
  $region7: #{basic_block_3d.5} parent=0 // loop_footer_branch
    %9 = sbr.rel target = $region3
  $region8: #{basic_block_3d.5} parent=0 // loop_exit
    _

// kernel: basic_block_3d.4
$region0: #{basic_block_3d.4}
  #allocation0 [shape = 'u32[]', space=smem, size = 0x4, offset = 0x4, fixed_abs, tag = 'smem constant byte address 0x4 - core index']
  #allocation1 [shape = 'u32[72,128]{1,0:T(1,128)}', space=vmem, size = 0x9000, scoped, tag = 'internal scratch']
  #allocation2 [shape = 'f32[216,256]{1,0:T(8,128)}', space=vmem, size = 0x36000, scoped, tag = 'scratch operand']
  %s0 = inlined_call_operand.vmem [shape: f32[2,8,1280], index: 0, kind: input, shape index: {}, may-alias: {0,1}]
  %s1 = inlined_call_operand.vmem [shape: f32[2,8,1280], index: 1, kind: input, shape index: {}, may-alias: {0,1}]
  %s2 = inlined_call_operand.vmem [shape: f32[8,216], index: 2, kind: input, shape index: {}]
  %s3 = inlined_call_operand.vmem [shape: f32[1,1024], index: 3, kind: input, shape index: {}]
  %s4 = inlined_call_operand.vmem [shape: f32[2,8,1024], index: 4, kind: output, shape index: {0}]
  %s5 = inlined_call_operand.vmem [shape: f32[2,4,8,1], index: 5, kind: output, shape index: {1}]
  %s6 = inlined_call_operand.vmem [shape: f32[2,4,8,1], index: 6, kind: output, shape index: {2}]
  %7 = xla_tuple %s4, %s5, %s6
  %s8 = sld [smem:[#allocation0]]
  $region65: #{basic_block_3d.4} parent=0
    _
  %s10 = ssub.s32 1, %s8
  %s11 = scalar_select 0, %s10, %s8
  loop: start=0, step=1, limit=10
  $region2: #{basic_block_3d.4} parent=0 // loop_pre_header
    _
  $region3: #{basic_block_3d.4} parent=0 // loop_header
    %s13 = sphi 0, %s17
    %p14 = scmp.ge.s32.totalorder %s13, 10
    %s20 = sphi 0, %s32
    %s21 = sphi 0, %s28
    %s22 = sphi 0, %s20
    %s23 = sphi 0, %s21
    %s24 = sphi 0, %s22
    %s25 = sphi 0, %s23
    %s37 = sphi 0, %s39
    %s40 = sphi 0, %s37
    %s41 = sphi 0, %s40
    %s57 = sphi 0, %s41
    %s67 = sphi 0, %s69
    %s70 = sphi 0, %s67
    %s71 = sphi 0, %s70
    %s87 = sphi 0, %s71
    %s91 = sphi 0, %s91
    %s93 = sphi 0, %s91
    %s94 = sphi 0, %s93
    %s108 = sphi 0, %s94
    %s114 = sphi 0, %s116
    %s117 = sphi 0, %s114
    %s118 = sphi 0, %s117
    %s134 = sphi 0, %s118
    %s142 = sphi 0, %s144
    %s145 = sphi 0, %s142
    %s146 = sphi 0, %s145
    %s162 = sphi 0, %s146
    %s170 = sphi 0, %s172
    %s173 = sphi 0, %s170
    %s174 = sphi 0, %s173
    %s190 = sphi 0, %s174
    %s198 = sphi 0, %s200
    %s201 = sphi 0, %s198
    %s202 = sphi 0, %s201
    %s218 = sphi 0, %s202
  $region4: #{basic_block_3d.4} parent=0 // loop_header_branch
    %16 = sbr.rel (%p14) target = $region8
  $region5: #{basic_block_3d.4} parent=0 // loop_body
    %s18 = ssub.s32 %s13, 1
    %s19 = ssub.s32 %s13, 2
    %s26 = sadd.s32 1, %s21
    %p27 = scmp.ge.s32.totalorder %s26, 4
    %s28 = scalar_select %p27, 0, %s26
    %s29 = sadd.s32 1, %s20
    %s30 = scalar_select %p27, %s29, %s20
    %p31 = scmp.ge.s32.totalorder %s30, 2
    %s32 = scalar_select %p31, 0, %s30
    %s33 = ssub.s32 %s20, %s32
    %s34 = ssub.s32 %s21, %s28
    %s35 = sor.u32 %s33, %s34
    %p36 = scmp.eq.s32.totalorder %s35, 0
    %s38 = sadd.s32 %s37, 1
    %s39 = scalar_select %p36, %s37, %s38
    %p42 = pneg %p36
    %p43 = scmp.eq.s32.totalorder %s13, 7
    %p44 = por %p42, %p43
    %p45 = scmp.ne.s32.totalorder %s37, %s40
    %p46 = scmp.eq.s32.totalorder %s13, 0
    %p47 = por %p45, %p46
    %p48 = scmp.ne.s32.totalorder %s37, %s40
    %p49 = scmp.eq.s32.totalorder %s18, 7
    %p50 = por %p48, %p49
    %p51 = scmp.ne.s32.totalorder %s40, %s41
    %p52 = scmp.eq.s32.totalorder %s18, 0
    %p53 = por %p51, %p52
    %p54 = scmp.ne.s32.totalorder %s40, %s41
    %p55 = scmp.eq.s32.totalorder %s19, 7
    %p56 = por %p54, %p55
    %p58 = scmp.ne.s32.totalorder %s41, %s57
    %p59 = scmp.eq.s32.totalorder %s19, 0
    %p60 = por %p58, %p59
    %s61 = sadd.s32 %s21, 1
    %s62 = sadd.s32 %s28, 1
    %s63 = ssub.s32 %s20, %s32
    %s64 = ssub.s32 %s61, %s62
    %s65 = sor.u32 %s63, %s64
    %p66 = scmp.eq.s32.totalorder %s65, 0
    %s68 = sadd.s32 %s67, 1
    %s69 = scalar_select %p66, %s67, %s68
    %p72 = pneg %p66
    %p73 = scmp.eq.s32.totalorder %s13, 7
    %p74 = por %p72, %p73
    %p75 = scmp.ne.s32.totalorder %s67, %s70
    %p76 = scmp.eq.s32.totalorder %s13, 0
    %p77 = por %p75, %p76
    %p78 = scmp.ne.s32.totalorder %s67, %s70
    %p79 = scmp.eq.s32.totalorder %s18, 7
    %p80 = por %p78, %p79
    %p81 = scmp.ne.s32.totalorder %s70, %s71
    %p82 = scmp.eq.s32.totalorder %s18, 0
    %p83 = por %p81, %p82
    %p84 = scmp.ne.s32.totalorder %s70, %s71
    %p85 = scmp.eq.s32.totalorder %s19, 7
    %p86 = por %p84, %p85
    %p88 = scmp.ne.s32.totalorder %s71, %s87
    %p89 = scmp.eq.s32.totalorder %s19, 0
    %p90 = por %p88, %p89
    %s92 = sadd.s32 %s91, 1
    %p95 = scmp.eq.s32.totalorder %s13, 7
    %p96 = scmp.ne.s32.totalorder %s91, %s93
    %p97 = scmp.eq.s32.totalorder %s13, 0
    %p98 = por %p96, %p97
    %p99 = scmp.ne.s32.totalorder %s91, %s93
    %p100 = scmp.eq.s32.totalorder %s18, 7
    %p101 = por %p99, %p100
    %p102 = scmp.ne.s32.totalorder %s93, %s94
    %p103 = scmp.eq.s32.totalorder %s18, 0
    %p104 = por %p102, %p103
    %p105 = scmp.ne.s32.totalorder %s93, %s94
    %p106 = scmp.eq.s32.totalorder %s19, 7
    %p107 = por %p105, %p106
    %p109 = scmp.ne.s32.totalorder %s94, %s108
    %p110 = scmp.eq.s32.totalorder %s19, 0
    %p111 = por %p109, %p110
    %s112 = ssub.s32 %s21, %s28
    %p113 = scmp.eq.s32.totalorder %s112, 0
    %s115 = sadd.s32 %s114, 1
    %s116 = scalar_select %p113, %s114, %s115
    %p119 = pneg %p113
    %p120 = scmp.eq.s32.totalorder %s13, 7
    %p121 = por %p119, %p120
    %p122 = scmp.ne.s32.totalorder %s114, %s117
    %p123 = scmp.eq.s32.totalorder %s13, 0
    %p124 = por %p122, %p123
    %p125 = scmp.ne.s32.totalorder %s114, %s117
    %p126 = scmp.eq.s32.totalorder %s18, 7
    %p127 = por %p125, %p126
    %p128 = scmp.ne.s32.totalorder %s117, %s118
    %p129 = scmp.eq.s32.totalorder %s18, 0
    %p130 = por %p128, %p129
    %p131 = scmp.ne.s32.totalorder %s117, %s118
    %p132 = scmp.eq.s32.totalorder %s19, 7
    %p133 = por %p131, %p132
    %p135 = scmp.ne.s32.totalorder %s118, %s134
    %p136 = scmp.eq.s32.totalorder %s19, 0
    %p137 = por %p135, %p136
    %s138 = ssub.s32 %s20, %s32
    %s139 = ssub.s32 %s21, %s28
    %s140 = sor.u32 %s138, %s139
    %p141 = scmp.eq.s32.totalorder %s140, 0
    %s143 = sadd.s32 %s142, 1
    %s144 = scalar_select %p141, %s142, %s143
    %p147 = pneg %p141
    %p148 = scmp.eq.s32.totalorder %s13, 7
    %p149 = por %p147, %p148
    %p150 = scmp.ne.s32.totalorder %s142, %s145
    %p151 = scmp.eq.s32.totalorder %s13, 0
    %p152 = por %p150, %p151
    %p153 = scmp.ne.s32.totalorder %s142, %s145
    %p154 = scmp.eq.s32.totalorder %s18, 7
    %p155 = por %p153, %p154
    %p156 = scmp.ne.s32.totalorder %s145, %s146
    %p157 = scmp.eq.s32.totalorder %s18, 0
    %p158 = por %p156, %p157
    %p159 = scmp.ne.s32.totalorder %s145, %s146
    %p160 = scmp.eq.s32.totalorder %s19, 7
    %p161 = por %p159, %p160
    %p163 = scmp.ne.s32.totalorder %s146, %s162
    %p164 = scmp.eq.s32.totalorder %s19, 0
    %p165 = por %p163, %p164
    %s166 = ssub.s32 %s20, %s32
    %s167 = ssub.s32 %s21, %s28
    %s168 = sor.u32 %s166, %s167
    %p169 = scmp.eq.s32.totalorder %s168, 0
    %s171 = sadd.s32 %s170, 1
    %s172 = scalar_select %p169, %s170, %s171
    %p175 = pneg %p169
    %p176 = scmp.eq.s32.totalorder %s13, 7
    %p177 = por %p175, %p176
    %p178 = scmp.ne.s32.totalorder %s170, %s173
    %p179 = scmp.eq.s32.totalorder %s13, 0
    %p180 = por %p178, %p179
    %p181 = scmp.ne.s32.totalorder %s170, %s173
    %p182 = scmp.eq.s32.totalorder %s18, 7
    %p183 = por %p181, %p182
    %p184 = scmp.ne.s32.totalorder %s173, %s174
    %p185 = scmp.eq.s32.totalorder %s18, 0
    %p186 = por %p184, %p185
    %p187 = scmp.ne.s32.totalorder %s173, %s174
    %p188 = scmp.eq.s32.totalorder %s19, 7
    %p189 = por %p187, %p188
    %p191 = scmp.ne.s32.totalorder %s174, %s190
    %p192 = scmp.eq.s32.totalorder %s19, 0
    %p193 = por %p191, %p192
    %s194 = ssub.s32 %s20, %s32
    %s195 = ssub.s32 %s21, %s28
    %s196 = sor.u32 %s194, %s195
    %p197 = scmp.eq.s32.totalorder %s196, 0
    %s199 = sadd.s32 %s198, 1
    %s200 = scalar_select %p197, %s198, %s199
    %p203 = pneg %p197
    %p204 = scmp.eq.s32.totalorder %s13, 7
    %p205 = por %p203, %p204
    %p206 = scmp.ne.s32.totalorder %s198, %s201
    %p207 = scmp.eq.s32.totalorder %s13, 0
    %p208 = por %p206, %p207
    %p209 = scmp.ne.s32.totalorder %s198, %s201
    %p210 = scmp.eq.s32.totalorder %s18, 7
    %p211 = por %p209, %p210
    %p212 = scmp.ne.s32.totalorder %s201, %s202
    %p213 = scmp.eq.s32.totalorder %s18, 0
    %p214 = por %p212, %p213
    %p215 = scmp.ne.s32.totalorder %s201, %s202
    %p216 = scmp.eq.s32.totalorder %s19, 7
    %p217 = por %p215, %p216
    %p219 = scmp.ne.s32.totalorder %s202, %s218
    %p220 = scmp.eq.s32.totalorder %s19, 0
    %p221 = por %p219, %p220
    %p222 = scmp.le.s32.totalorder 1, %s13
    %p223 = scmp.lt.s32.totalorder %s13, 9
    %p224 = pnand %p222, %p223
    %p225 = pneg %p224
    // Predicated region
    $region9: #{basic_block_3d.4} parent=5 // pred_check
      _
    $region10: #{basic_block_3d.4} parent=5 // pred_check_branch
      %227 = sbr.rel (%p224) target = $region12
    $region11: #{basic_block_3d.4} parent=5 // pred_region
      %s228 = ssub.s32 %s13, 1
      // Predicated region
      $region13: #{basic_block_3d.4} parent=11 // pred_check
        %p229 = pneg %p104
      $region14: #{basic_block_3d.4} parent=11 // pred_check_branch
        %231 = sbr.rel (%p229) target = $region16
      $region15: #{basic_block_3d.4} parent=11 // pred_region
        _
      $region16: #{basic_block_3d.4} parent=11 // pred_fallthru
        _
    $region12: #{basic_block_3d.4} parent=5 // pred_fallthru
      _
    %p232 = scmp.lt.s32.totalorder %s13, 8
    // Predicated region
    $region17: #{basic_block_3d.4} parent=5 // pred_check
      %p233 = pneg %p232
    $region18: #{basic_block_3d.4} parent=5 // pred_check_branch
      %235 = sbr.rel (%p233) target = $region20
    $region19: #{basic_block_3d.4} parent=5 // pred_region
      // Predicated region
      $region21: #{basic_block_3d.4} parent=19 // pred_check
        %p236 = pneg %p47
      $region22: #{basic_block_3d.4} parent=19 // pred_check_branch
        %238 = sbr.rel (%p236) target = $region24
      $region23: #{basic_block_3d.4} parent=19 // pred_region
        %s239 = smul.u32 2, %s21
        %p240 = scmp.lt.s32.totalorder %s20, 1
        %s241 = scalar_select %p240, %s20, 1
        %p242 = scmp.lt.s32.totalorder %s239, 9
        %s243 = scalar_select %p242, %s239, 9
        %s244 = smul.addr %s241, 10
        %s245 = sadd.s32 %s243, %s244
        %s246 = smul.addr %s245, 8
        %s247 = scalar_lea.vmem %s0, %s246
        %s248 = smul.u32 2, %s21
      $region24: #{basic_block_3d.4} parent=19 // pred_fallthru
        _
      // Predicated region
      $region25: #{basic_block_3d.4} parent=19 // pred_check
        %p249 = pneg %p77
      $region26: #{basic_block_3d.4} parent=19 // pred_check_branch
        %251 = sbr.rel (%p249) target = $region28
      $region27: #{basic_block_3d.4} parent=19 // pred_region
        %s252 = sadd.s32 %s21, 1
        %s253 = smul.u32 2, %s252
        %p254 = scmp.lt.s32.totalorder %s20, 1
        %s255 = scalar_select %p254, %s20, 1
        %p256 = scmp.lt.s32.totalorder %s253, 9
        %s257 = scalar_select %p256, %s253, 9
        %s258 = smul.addr %s255, 10
        %s259 = sadd.s32 %s257, %s258
        %s260 = smul.addr %s259, 8
        %s261 = scalar_lea.vmem %s1, %s260
        %s262 = sadd.s32 %s21, 1
        %s263 = smul.u32 2, %s262
      $region28: #{basic_block_3d.4} parent=19 // pred_fallthru
        _
      // Predicated region
      $region29: #{basic_block_3d.4} parent=19 // pred_check
        %p264 = pneg %p124
      $region30: #{basic_block_3d.4} parent=19 // pred_check_branch
        %266 = sbr.rel (%p264) target = $region32
      $region31: #{basic_block_3d.4} parent=19 // pred_region
        %s267 = smul.u32 2, %s21
        %p268 = scmp.lt.s32.totalorder %s267, 7
        %s269 = scalar_select %p268, %s267, 7
        %s270 = scalar_lea.vmem %s3, %s269
        %s271 = smul.u32 2, %s21
      $region32: #{basic_block_3d.4} parent=19 // pred_fallthru
        _
    $region20: #{basic_block_3d.4} parent=5 // pred_fallthru
      _
    %p272 = scmp.le.s32.totalorder 1, %s13
    %p273 = scmp.lt.s32.totalorder %s13, 9
    %p274 = pnand %p272, %p273
    %p275 = pneg %p274
    // Predicated region
    $region33: #{basic_block_3d.4} parent=5 // pred_check
      _
    $region34: #{basic_block_3d.4} parent=5 // pred_check_branch
      %277 = sbr.rel (%p274) target = $region36
    $region35: #{basic_block_3d.4} parent=5 // pred_region
      %s278 = ssub.s32 %s13, 1
      %s279 = smul.u32 2, %s23
      %p280 = scmp.lt.s32.totalorder %s22, 1
      %s281 = scalar_select %p280, %s22, 1
      %p282 = scmp.lt.s32.totalorder %s279, 9
      %s283 = scalar_select %p282, %s279, 9
      %s284 = smul.addr %s281, 10
      %s285 = sadd.s32 %s283, %s284
      %s286 = smul.addr %s285, 8
      %s287 = scalar_lea.vmem %s0, %s286
      %p288 = pneg %p53
      %p289 = pneg %p50
      %s290 = sadd.s32 %s23, 1
      %s291 = smul.u32 2, %s290
      %p292 = scmp.lt.s32.totalorder %s22, 1
      %s293 = scalar_select %p292, %s22, 1
      %p294 = scmp.lt.s32.totalorder %s291, 9
      %s295 = scalar_select %p294, %s291, 9
      %s296 = smul.addr %s293, 10
      %s297 = sadd.s32 %s295, %s296
      %s298 = smul.addr %s297, 8
      %s299 = scalar_lea.vmem %s1, %s298
      %p300 = pneg %p83
      %p301 = pneg %p80
      %p302 = pneg %p104
      %p303 = pneg %p101
      %s304 = smul.u32 2, %s23
      %p305 = scmp.lt.s32.totalorder %s304, 7
      %s306 = scalar_select %p305, %s304, 7
      %s307 = scalar_lea.vmem %s3, %s306
      %p308 = pneg %p130
      %p309 = pneg %p127
      %p310 = pneg %p158
      %p311 = pneg %p155
      %s312 = smul.u32 2, %s23
      %p313 = scmp.lt.s32.totalorder %s22, 1
      %s314 = scalar_select %p313, %s22, 1
      %p315 = scmp.lt.s32.totalorder %s312, 7
      %s316 = scalar_select %p315, %s312, 7
      %s317 = smul.addr %s314, 8
      %s318 = sadd.s32 %s316, %s317
      %s319 = smul.addr %s318, 8
      %s320 = scalar_lea.vmem %s4, %s319
      %p321 = pneg %p186
      %p322 = pneg %p183
      %p323 = scmp.lt.s32.totalorder %s22, 1
      %s324 = scalar_select %p323, %s22, 1
      %p325 = scmp.lt.s32.totalorder %s23, 3
      %s326 = scalar_select %p325, %s23, 3
      %s327 = smul.addr %s324, 4
      %s328 = sadd.s32 %s326, %s327
      %s329 = smul.addr %s328, 8
      %s330 = scalar_lea.vmem %s5, %s329
      %p331 = pneg %p214
      %p332 = pneg %p211
      %p333 = scmp.lt.s32.totalorder %s22, 1
      %s334 = scalar_select %p333, %s22, 1
      %p335 = scmp.lt.s32.totalorder %s23, 3
      %s336 = scalar_select %p335, %s23, 3
      %s337 = smul.addr %s334, 4
      %s338 = sadd.s32 %s336, %s337
      %s339 = smul.addr %s338, 8
      %s340 = scalar_lea.vmem %s6, %s339
      %s341 = smul.u32 2, %s23
      %p342 = scmp.lt.s32.totalorder %s22, 1
      %s343 = scalar_select %p342, %s22, 1
      %p344 = scmp.lt.s32.totalorder %s341, 9
      %s345 = scalar_select %p344, %s341, 9
      %s346 = smul.addr %s343, 10
      %s347 = sadd.s32 %s345, %s346
      %s348 = smul.addr %s347, 8
      %s349 = scalar_lea.vmem %s0, %s348
      %s350 = smul.u32 2, %s23
      %s351 = sadd.s32 %s23, 1
      %s352 = smul.u32 2, %s351
      %p353 = scmp.lt.s32.totalorder %s22, 1
      %s354 = scalar_select %p353, %s22, 1
      %p355 = scmp.lt.s32.totalorder %s352, 9
      %s356 = scalar_select %p355, %s352, 9
      %s357 = smul.addr %s354, 10
      %s358 = sadd.s32 %s356, %s357
      %s359 = smul.addr %s358, 8
      %s360 = scalar_lea.vmem %s1, %s359
      %s361 = sadd.s32 %s23, 1
      %s362 = smul.u32 2, %s361
      %s363 = smul.u32 2, %s23
      %p364 = scmp.lt.s32.totalorder %s363, 7
      %s365 = scalar_select %p364, %s363, 7
      %s366 = scalar_lea.vmem %s3, %s365
      %s367 = smul.u32 2, %s23
      %s368 = smul.u32 2, %s23
      %p369 = scmp.lt.s32.totalorder %s22, 1
      %s370 = scalar_select %p369, %s22, 1
      %p371 = scmp.lt.s32.totalorder %s368, 7
      %s372 = scalar_select %p371, %s368, 7
      %s373 = smul.addr %s370, 8
      %s374 = sadd.s32 %s372, %s373
      %s375 = smul.addr %s374, 8
      %s376 = scalar_lea.vmem %s4, %s375
      %s377 = smul.u32 2, %s23
      %p378 = scmp.lt.s32.totalorder %s22, 1
      %s379 = scalar_select %p378, %s22, 1
      %p380 = scmp.lt.s32.totalorder %s23, 3
      %s381 = scalar_select %p380, %s23, 3
      %s382 = smul.addr %s379, 4
      %s383 = sadd.s32 %s381, %s382
      %s384 = smul.addr %s383, 8
      %s385 = scalar_lea.vmem %s5, %s384
      %p386 = scmp.lt.s32.totalorder %s22, 1
      %s387 = scalar_select %p386, %s22, 1
      %p388 = scmp.lt.s32.totalorder %s23, 3
      %s389 = scalar_select %p388, %s23, 3
      %s390 = smul.addr %s387, 4
      %s391 = sadd.s32 %s389, %s390
      %s392 = smul.addr %s391, 8
      %s393 = scalar_lea.vmem %s6, %s392
      %v394 = vld [vmem:[%s349] sm:$0xff]
      %v395 = vld [vmem:[%s349 + $0x8] sm:$0xff]
      %v396 = vld [vmem:[%s360] sm:$0xff]
      %v397 = vld [vmem:[%s360 + $0x8] sm:$0xff]
      %398 = vst [vmem:[#allocation2] sm:$0xff] %v394
      %399 = vst [vmem:[#allocation2 + $0x8] sm:$0xff] %v395
      %403 = vrot.lane.b32.xlu0 %v394, 127
      %v404 = vpop.permute.xlu0 %403
      %405 = vrot.lane.b32.xlu0 %v395, 127
      %v406 = vpop.permute.xlu0 %405
      %407 = vrot.lane.b32.xlu0 %v396, 127
      %v408 = vpop.permute.xlu0 %407
      %vm409 = vcmask 1039360
      %v410 = vsel %vm409, %v404, %v406
      %v411 = vsel %vm409, %v406, %v408
      %414 = vst [vmem:[#allocation2 + $0x10] sm:$0xff] %v410
      %415 = vst [vmem:[#allocation2 + $0x18] sm:$0xff] %v411
      %416 = vrot.lane.b32.xlu0 %v394, 126
      %v417 = vpop.permute.xlu0 %416
      %418 = vrot.lane.b32.xlu0 %v395, 126
      %v419 = vpop.permute.xlu0 %418
      %420 = vrot.lane.b32.xlu0 %v396, 126
      %v421 = vpop.permute.xlu0 %420
      %vm422 = vcmask 1031168
      %v423 = vsel %vm422, %v417, %v419
      %v424 = vsel %vm422, %v419, %v421
      %427 = vst [vmem:[#allocation2 + $0x20] sm:$0xff] %v423
      %428 = vst [vmem:[#allocation2 + $0x28] sm:$0xff] %v424
      %429 = vrot.lane.b32.xlu0 %v394, 118
      %v430 = vpop.permute.xlu0 %429
      %431 = vrot.lane.b32.xlu0 %v395, 118
      %v432 = vpop.permute.xlu0 %431
      %433 = vrot.lane.b32.xlu0 %v396, 118
      %v434 = vpop.permute.xlu0 %433
      %vm435 = vcmask 965632
      %v436 = vsel %vm435, %v430, %v432
      %v437 = vsel %vm435, %v432, %v434
      %440 = vst [vmem:[#allocation2 + $0x30] sm:$0xff] %v436
      %441 = vst [vmem:[#allocation2 + $0x38] sm:$0xff] %v437
      %442 = vrot.lane.b32.xlu0 %v394, 117
      %v443 = vpop.permute.xlu0 %442
      %444 = vrot.lane.b32.xlu0 %v395, 117
      %v445 = vpop.permute.xlu0 %444
      %446 = vrot.lane.b32.xlu0 %v396, 117
      %v447 = vpop.permute.xlu0 %446
      %vm448 = vcmask 957440
      %v449 = vsel %vm448, %v443, %v445
      %v450 = vsel %vm448, %v445, %v447
      %453 = vst [vmem:[#allocation2 + $0x40] sm:$0xff] %v449
      %454 = vst [vmem:[#allocation2 + $0x48] sm:$0xff] %v450
      %455 = vrot.lane.b32.xlu0 %v394, 116
      %v456 = vpop.permute.xlu0 %455
      %457 = vrot.lane.b32.xlu0 %v395, 116
      %v458 = vpop.permute.xlu0 %457
      %459 = vrot.lane.b32.xlu0 %v396, 116
      %v460 = vpop.permute.xlu0 %459
      %vm461 = vcmask 949248
      %v462 = vsel %vm461, %v456, %v458
      %v463 = vsel %vm461, %v458, %v460
      %466 = vst [vmem:[#allocation2 + $0x50] sm:$0xff] %v462
      %467 = vst [vmem:[#allocation2 + $0x58] sm:$0xff] %v463
      %468 = vrot.lane.b32.xlu0 %v394, 108
      %v469 = vpop.permute.xlu0 %468
      %470 = vrot.lane.b32.xlu0 %v395, 108
      %v471 = vpop.permute.xlu0 %470
      %472 = vrot.lane.b32.xlu0 %v396, 108
      %v473 = vpop.permute.xlu0 %472
      %vm474 = vcmask 883712
      %v475 = vsel %vm474, %v469, %v471
      %v476 = vsel %vm474, %v471, %v473
      %479 = vst [vmem:[#allocation2 + $0x60] sm:$0xff] %v475
      %480 = vst [vmem:[#allocation2 + $0x68] sm:$0xff] %v476
      %481 = vrot.lane.b32.xlu0 %v394, 107
      %v482 = vpop.permute.xlu0 %481
      %483 = vrot.lane.b32.xlu0 %v395, 107
      %v484 = vpop.permute.xlu0 %483
      %485 = vrot.lane.b32.xlu0 %v396, 107
      %v486 = vpop.permute.xlu0 %485
      %vm487 = vcmask 875520
      %v488 = vsel %vm487, %v482, %v484
      %v489 = vsel %vm487, %v484, %v486
      %492 = vst [vmem:[#allocation2 + $0x70] sm:$0xff] %v488
      %493 = vst [vmem:[#allocation2 + $0x78] sm:$0xff] %v489
      %494 = vrot.lane.b32.xlu0 %v394, 106
      %v495 = vpop.permute.xlu0 %494
      %496 = vrot.lane.b32.xlu0 %v395, 106
      %v497 = vpop.permute.xlu0 %496
      %498 = vrot.lane.b32.xlu0 %v396, 106
      %v499 = vpop.permute.xlu0 %498
      %vm500 = vcmask 867328
      %v501 = vsel %vm500, %v495, %v497
      %v502 = vsel %vm500, %v497, %v499
      %505 = vst [vmem:[#allocation2 + $0x80] sm:$0xff] %v501
      %506 = vst [vmem:[#allocation2 + $0x88] sm:$0xff] %v502
      %507 = vrot.lane.b32.xlu0 %v394, 28
      %v508 = vpop.permute.xlu0 %507
      %509 = vrot.lane.b32.xlu0 %v395, 28
      %v510 = vpop.permute.xlu0 %509
      %511 = vrot.lane.b32.xlu0 %v396, 28
      %v512 = vpop.permute.xlu0 %511
      %vm513 = vcmask 228352
      %v514 = vsel %vm513, %v508, %v510
      %v515 = vsel %vm513, %v510, %v512
      %518 = vst [vmem:[#allocation2 + $0x90] sm:$0xff] %v514
      %519 = vst [vmem:[#allocation2 + $0x98] sm:$0xff] %v515
      %520 = vrot.lane.b32.xlu0 %v394, 27
      %v521 = vpop.permute.xlu0 %520
      %522 = vrot.lane.b32.xlu0 %v395, 27
      %v523 = vpop.permute.xlu0 %522
      %524 = vrot.lane.b32.xlu0 %v396, 27
      %v525 = vpop.permute.xlu0 %524
      %vm526 = vcmask 220160
      %v527 = vsel %vm526, %v521, %v523
      %v528 = vsel %vm526, %v523, %v525
      %531 = vst [vmem:[#allocation2 + $0xa0] sm:$0xff] %v527
      %532 = vst [vmem:[#allocation2 + $0xa8] sm:$0xff] %v528
      %533 = vrot.lane.b32.xlu0 %v394, 26
      %v534 = vpop.permute.xlu0 %533
      %535 = vrot.lane.b32.xlu0 %v395, 26
      %v536 = vpop.permute.xlu0 %535
      %537 = vrot.lane.b32.xlu0 %v396, 26
      %v538 = vpop.permute.xlu0 %537
      %vm539 = vcmask 211968
      %v540 = vsel %vm539, %v534, %v536
      %v541 = vsel %vm539, %v536, %v538
      %544 = vst [vmem:[#allocation2 + $0xb0] sm:$0xff] %v540
      %545 = vst [vmem:[#allocation2 + $0xb8] sm:$0xff] %v541
      %546 = vrot.lane.b32.xlu0 %v394, 18
      %v547 = vpop.permute.xlu0 %546
      %548 = vrot.lane.b32.xlu0 %v395, 18
      %v549 = vpop.permute.xlu0 %548
      %550 = vrot.lane.b32.xlu0 %v396, 18
      %v551 = vpop.permute.xlu0 %550
      %vm552 = vcmask 146432
      %v553 = vsel %vm552, %v547, %v549
      %v554 = vsel %vm552, %v549, %v551
      %557 = vst [vmem:[#allocation2 + $0xc0] sm:$0xff] %v553
      %558 = vst [vmem:[#allocation2 + $0xc8] sm:$0xff] %v554
      %559 = vrot.lane.b32.xlu0 %v394, 17
      %v560 = vpop.permute.xlu0 %559
      %561 = vrot.lane.b32.xlu0 %v395, 17
      %v562 = vpop.permute.xlu0 %561
      %563 = vrot.lane.b32.xlu0 %v396, 17
      %v564 = vpop.permute.xlu0 %563
      %vm565 = vcmask 138240
      %v566 = vsel %vm565, %v560, %v562
      %v567 = vsel %vm565, %v562, %v564
      %570 = vst [vmem:[#allocation2 + $0xd0] sm:$0xff] %v566
      %571 = vst [vmem:[#allocation2 + $0xd8] sm:$0xff] %v567
      %572 = vrot.lane.b32.xlu0 %v394, 16
      %v573 = vpop.permute.xlu0 %572
      %574 = vrot.lane.b32.xlu0 %v395, 16
      %v575 = vpop.permute.xlu0 %574
      %576 = vrot.lane.b32.xlu0 %v396, 16
      %v577 = vpop.permute.xlu0 %576
      %vm578 = vcmask 130048
      %v579 = vsel %vm578, %v573, %v575
      %v580 = vsel %vm578, %v575, %v577
      %583 = vst [vmem:[#allocation2 + $0xe0] sm:$0xff] %v579
      %584 = vst [vmem:[#allocation2 + $0xe8] sm:$0xff] %v580
      %585 = vrot.lane.b32.xlu0 %v394, 8
      %v586 = vpop.permute.xlu0 %585
      %587 = vrot.lane.b32.xlu0 %v395, 8
      %v588 = vpop.permute.xlu0 %587
      %589 = vrot.lane.b32.xlu0 %v396, 8
      %v590 = vpop.permute.xlu0 %589
      %vm591 = vcmask 64512
      %v592 = vsel %vm591, %v586, %v588
      %v593 = vsel %vm591, %v588, %v590
      %596 = vst [vmem:[#allocation2 + $0xf0] sm:$0xff] %v592
      %597 = vst [vmem:[#allocation2 + $0xf8] sm:$0xff] %v593
      %598 = vrot.lane.b32.xlu0 %v394, 7
      %v599 = vpop.permute.xlu0 %598
      %600 = vrot.lane.b32.xlu0 %v395, 7
      %v601 = vpop.permute.xlu0 %600
      %602 = vrot.lane.b32.xlu0 %v396, 7
      %v603 = vpop.permute.xlu0 %602
      %vm604 = vcmask 56320
      %v605 = vsel %vm604, %v599, %v601
      %v606 = vsel %vm604, %v601, %v603
      %609 = vst [vmem:[#allocation2 + $0x100] sm:$0xff] %v605
      %610 = vst [vmem:[#allocation2 + $0x108] sm:$0xff] %v606
      %611 = vrot.lane.b32.xlu0 %v394, 6
      %v612 = vpop.permute.xlu0 %611
      %613 = vrot.lane.b32.xlu0 %v395, 6
      %v614 = vpop.permute.xlu0 %613
      %615 = vrot.lane.b32.xlu0 %v396, 6
      %v616 = vpop.permute.xlu0 %615
      %vm617 = vcmask 48128
      %v618 = vsel %vm617, %v612, %v614
      %v619 = vsel %vm617, %v614, %v616
      %622 = vst [vmem:[#allocation2 + $0x110] sm:$0xff] %v618
      %623 = vst [vmem:[#allocation2 + $0x118] sm:$0xff] %v619
      %625 = vrot.lane.b32.xlu0 %v395, 56
      %v626 = vpop.permute.xlu0 %625
      %627 = vrot.lane.b32.xlu0 %v396, 56
      %v628 = vpop.permute.xlu0 %627
      %629 = vrot.lane.b32.xlu0 %v397, 56
      %v630 = vpop.permute.xlu0 %629
      %vm631 = vcmask 457728
      %v632 = vsel %vm631, %v626, %v628
      %v633 = vsel %vm631, %v628, %v630
      %636 = vst [vmem:[#allocation2 + $0x120] sm:$0xff] %v632
      %637 = vst [vmem:[#allocation2 + $0x128] sm:$0xff] %v633
      %638 = vrot.lane.b32.xlu0 %v395, 55
      %v639 = vpop.permute.xlu0 %638
      %640 = vrot.lane.b32.xlu0 %v396, 55
      %v641 = vpop.permute.xlu0 %640
      %642 = vrot.lane.b32.xlu0 %v397, 55
      %v643 = vpop.permute.xlu0 %642
      %vm644 = vcmask 449536
      %v645 = vsel %vm644, %v639, %v641
      %v646 = vsel %vm644, %v641, %v643
      %649 = vst [vmem:[#allocation2 + $0x130] sm:$0xff] %v645
      %650 = vst [vmem:[#allocation2 + $0x138] sm:$0xff] %v646
      %651 = vrot.lane.b32.xlu0 %v395, 54
      %v652 = vpop.permute.xlu0 %651
      %653 = vrot.lane.b32.xlu0 %v396, 54
      %v654 = vpop.permute.xlu0 %653
      %655 = vrot.lane.b32.xlu0 %v397, 54
      %v656 = vpop.permute.xlu0 %655
      %vm657 = vcmask 441344
      %v658 = vsel %vm657, %v652, %v654
      %v659 = vsel %vm657, %v654, %v656
      %662 = vst [vmem:[#allocation2 + $0x140] sm:$0xff] %v658
      %663 = vst [vmem:[#allocation2 + $0x148] sm:$0xff] %v659
      %664 = vrot.lane.b32.xlu0 %v395, 46
      %v665 = vpop.permute.xlu0 %664
      %666 = vrot.lane.b32.xlu0 %v396, 46
      %v667 = vpop.permute.xlu0 %666
      %668 = vrot.lane.b32.xlu0 %v397, 46
      %v669 = vpop.permute.xlu0 %668
      %vm670 = vcmask 375808
      %v671 = vsel %vm670, %v665, %v667
      %v672 = vsel %vm670, %v667, %v669
      %675 = vst [vmem:[#allocation2 + $0x150] sm:$0xff] %v671
      %676 = vst [vmem:[#allocation2 + $0x158] sm:$0xff] %v672
      %677 = vrot.lane.b32.xlu0 %v395, 45
      %v678 = vpop.permute.xlu0 %677
      %679 = vrot.lane.b32.xlu0 %v396, 45
      %v680 = vpop.permute.xlu0 %679
      %681 = vrot.lane.b32.xlu0 %v397, 45
      %v682 = vpop.permute.xlu0 %681
      %vm683 = vcmask 367616
      %v684 = vsel %vm683, %v678, %v680
      %v685 = vsel %vm683, %v680, %v682
      %688 = vst [vmem:[#allocation2 + $0x160] sm:$0xff] %v684
      %689 = vst [vmem:[#allocation2 + $0x168] sm:$0xff] %v685
      %690 = vrot.lane.b32.xlu0 %v395, 44
      %v691 = vpop.permute.xlu0 %690
      %692 = vrot.lane.b32.xlu0 %v396, 44
      %v693 = vpop.permute.xlu0 %692
      %694 = vrot.lane.b32.xlu0 %v397, 44
      %v695 = vpop.permute.xlu0 %694
      %vm696 = vcmask 359424
      %v697 = vsel %vm696, %v691, %v693
      %v698 = vsel %vm696, %v693, %v695
      %701 = vst [vmem:[#allocation2 + $0x170] sm:$0xff] %v697
      %702 = vst [vmem:[#allocation2 + $0x178] sm:$0xff] %v698
      %703 = vrot.lane.b32.xlu0 %v395, 36
      %v704 = vpop.permute.xlu0 %703
      %705 = vrot.lane.b32.xlu0 %v396, 36
      %v706 = vpop.permute.xlu0 %705
      %707 = vrot.lane.b32.xlu0 %v397, 36
      %v708 = vpop.permute.xlu0 %707
      %vm709 = vcmask 293888
      %v710 = vsel %vm709, %v704, %v706
      %v711 = vsel %vm709, %v706, %v708
      %714 = vst [vmem:[#allocation2 + $0x180] sm:$0xff] %v710
      %715 = vst [vmem:[#allocation2 + $0x188] sm:$0xff] %v711
      %716 = vrot.lane.b32.xlu0 %v395, 35
      %v717 = vpop.permute.xlu0 %716
      %718 = vrot.lane.b32.xlu0 %v396, 35
      %v719 = vpop.permute.xlu0 %718
      %720 = vrot.lane.b32.xlu0 %v397, 35
      %v721 = vpop.permute.xlu0 %720
      %vm722 = vcmask 285696
      %v723 = vsel %vm722, %v717, %v719
      %v724 = vsel %vm722, %v719, %v721
      %727 = vst [vmem:[#allocation2 + $0x190] sm:$0xff] %v723
      %728 = vst [vmem:[#allocation2 + $0x198] sm:$0xff] %v724
      %729 = vrot.lane.b32.xlu0 %v395, 34
      %v730 = vpop.permute.xlu0 %729
      %731 = vrot.lane.b32.xlu0 %v396, 34
      %v732 = vpop.permute.xlu0 %731
      %733 = vrot.lane.b32.xlu0 %v397, 34
      %v734 = vpop.permute.xlu0 %733
      %vm735 = vcmask 277504
      %v736 = vsel %vm735, %v730, %v732
      %v737 = vsel %vm735, %v732, %v734
      %740 = vst [vmem:[#allocation2 + $0x1a0] sm:$0xff] %v736
      %741 = vst [vmem:[#allocation2 + $0x1a8] sm:$0xff] %v737
      %v742 = vld [vmem:[%s2] sm:$0xff]
      %v743 = vld [vmem:[%s2 + $0x8] sm:$0xff]
      %v744 = vld [vmem:[#allocation2] sm:$0xff]
      %v745 = vld [vmem:[#allocation2 + $0x8] sm:$0xff]
      %v746 = vld [vmem:[#allocation2 + $0x10] sm:$0xff]
      %v747 = vld [vmem:[#allocation2 + $0x18] sm:$0xff]
      %v748 = vld [vmem:[#allocation2 + $0x20] sm:$0xff]
      %v749 = vld [vmem:[#allocation2 + $0x28] sm:$0xff]
      %v750 = vld [vmem:[#allocation2 + $0x30] sm:$0xff]
      %v751 = vld [vmem:[#allocation2 + $0x38] sm:$0xff]
      %v752 = vld [vmem:[#allocation2 + $0x40] sm:$0xff]
      %v753 = vld [vmem:[#allocation2 + $0x48] sm:$0xff]
      %v754 = vld [vmem:[#allocation2 + $0x50] sm:$0xff]
      %v755 = vld [vmem:[#allocation2 + $0x58] sm:$0xff]
      %v756 = vld [vmem:[#allocation2 + $0x60] sm:$0xff]
      %v757 = vld [vmem:[#allocation2 + $0x68] sm:$0xff]
      %v758 = vld [vmem:[#allocation2 + $0x70] sm:$0xff]
      %v759 = vld [vmem:[#allocation2 + $0x78] sm:$0xff]
      %v760 = vld [vmem:[#allocation2 + $0x80] sm:$0xff]
      %v761 = vld [vmem:[#allocation2 + $0x88] sm:$0xff]
      %v762 = vld [vmem:[#allocation2 + $0x90] sm:$0xff]
      %v763 = vld [vmem:[#allocation2 + $0x98] sm:$0xff]
      %v764 = vld [vmem:[#allocation2 + $0xa0] sm:$0xff]
      %v765 = vld [vmem:[#allocation2 + $0xa8] sm:$0xff]
      %v766 = vld [vmem:[#allocation2 + $0xb0] sm:$0xff]
      %v767 = vld [vmem:[#allocation2 + $0xb8] sm:$0xff]
      %v768 = vld [vmem:[#allocation2 + $0xc0] sm:$0xff]
      %v769 = vld [vmem:[#allocation2 + $0xc8] sm:$0xff]
      %v770 = vld [vmem:[#allocation2 + $0xd0] sm:$0xff]
      %v771 = vld [vmem:[#allocation2 + $0xd8] sm:$0xff]
      %v772 = vld [vmem:[#allocation2 + $0xe0] sm:$0xff]
      %v773 = vld [vmem:[#allocation2 + $0xe8] sm:$0xff]
      %v774 = vld [vmem:[#allocation2 + $0xf0] sm:$0xff]
      %v775 = vld [vmem:[#allocation2 + $0xf8] sm:$0xff]
      %v776 = vld [vmem:[#allocation2 + $0x100] sm:$0xff]
      %v777 = vld [vmem:[#allocation2 + $0x108] sm:$0xff]
      %v778 = vld [vmem:[#allocation2 + $0x110] sm:$0xff]
      %v779 = vld [vmem:[#allocation2 + $0x118] sm:$0xff]
      %v780 = vld [vmem:[#allocation2 + $0x120] sm:$0xff]
      %v781 = vld [vmem:[#allocation2 + $0x128] sm:$0xff]
      %v782 = vld [vmem:[#allocation2 + $0x130] sm:$0xff]
      %v783 = vld [vmem:[#allocation2 + $0x138] sm:$0xff]
      %v784 = vld [vmem:[#allocation2 + $0x140] sm:$0xff]
      %v785 = vld [vmem:[#allocation2 + $0x148] sm:$0xff]
      %v786 = vld [vmem:[#allocation2 + $0x150] sm:$0xff]
      %v787 = vld [vmem:[#allocation2 + $0x158] sm:$0xff]
      %v788 = vld [vmem:[#allocation2 + $0x160] sm:$0xff]
      %v789 = vld [vmem:[#allocation2 + $0x168] sm:$0xff]
      %v790 = vld [vmem:[#allocation2 + $0x170] sm:$0xff]
      %v791 = vld [vmem:[#allocation2 + $0x178] sm:$0xff]
      %v792 = vld [vmem:[#allocation2 + $0x180] sm:$0xff]
      %v793 = vld [vmem:[#allocation2 + $0x188] sm:$0xff]
      %v794 = vld [vmem:[#allocation2 + $0x190] sm:$0xff]
      %v795 = vld [vmem:[#allocation2 + $0x198] sm:$0xff]
      %v796 = vld [vmem:[#allocation2 + $0x1a0] sm:$0xff]
      %v797 = vld [vmem:[#allocation2 + $0x1a8] sm:$0xff]
      %vm798 = vcmask 719872
      %v800 = vsel %vm798, %v743, 0
      %802 = vmatpush.msra.mxu0 %v774
      %803 = vmatpush.msra.mxu0 %v772
      %804 = vmatpush.msra.mxu0 %v770
      %805 = vmatpush.msra.mxu0 %v768
      %806 = vmatpush.msra.mxu0 %v766
      %807 = vmatpush.msra.mxu0 %v764
      %808 = vmatpush.msra.mxu0 %v762
      %809 = vmatpush.msra.mxu0 %v760
      %810 = vmatpush.msra.mxu0 %v758
      %811 = vmatpush.msra.mxu0 %v756
      %812 = vmatpush.msra.mxu0 %v754
      %813 = vmatpush.msra.mxu0 %v752
      %814 = vmatpush.msra.mxu0 %v750
      %815 = vmatpush.msra.mxu0 %v748
      %816 = vmatpush.msra.mxu0 %v746
      %817 = vmatpush.msra.mxu0 %v744
      %818 = vmatmul.f32.gmra.mxu0 %v742
      %v819 = vpop.f32.mrf.mxu0
      %v820 = vadd.f32 0.0, %v819
      %821 = vdwg.mxu0
      %822 = vmatpush.msra.mxu0 0.0
      %823 = vmatpush.msra.mxu0 0.0
      %824 = vmatpush.msra.mxu0 0.0
      %825 = vmatpush.msra.mxu0 0.0
      %826 = vmatpush.msra.mxu0 0.0
      %827 = vmatpush.msra.mxu0 %v796
      %828 = vmatpush.msra.mxu0 %v794
      %829 = vmatpush.msra.mxu0 %v792
      %830 = vmatpush.msra.mxu0 %v790
      %831 = vmatpush.msra.mxu0 %v788
      %832 = vmatpush.msra.mxu0 %v786
      %833 = vmatpush.msra.mxu0 %v784
      %834 = vmatpush.msra.mxu0 %v782
      %835 = vmatpush.msra.mxu0 %v780
      %836 = vmatpush.msra.mxu0 %v778
      %837 = vmatpush.msra.mxu0 %v776
      %838 = vmatmul.f32.gmra.mxu0 %v800
      %v839 = vpop.f32.mrf.mxu0
      %v840 = vadd.f32 %v820, %v839
      %841 = vdwg.mxu0
      %842 = vmatpush.msra.mxu0 %v775
      %843 = vmatpush.msra.mxu0 %v773
      %844 = vmatpush.msra.mxu0 %v771
      %845 = vmatpush.msra.mxu0 %v769
      %846 = vmatpush.msra.mxu0 %v767
      %847 = vmatpush.msra.mxu0 %v765
      %848 = vmatpush.msra.mxu0 %v763
      %849 = vmatpush.msra.mxu0 %v761
      %850 = vmatpush.msra.mxu0 %v759
      %851 = vmatpush.msra.mxu0 %v757
      %852 = vmatpush.msra.mxu0 %v755
      %853 = vmatpush.msra.mxu0 %v753
      %854 = vmatpush.msra.mxu0 %v751
      %855 = vmatpush.msra.mxu0 %v749
      %856 = vmatpush.msra.mxu0 %v747
      %857 = vmatpush.msra.mxu0 %v745
      %858 = vmatmul.f32.gmra.mxu0 %v742
      %v859 = vpop.f32.mrf.mxu0
      %v860 = vadd.f32 0.0, %v859
      %861 = vdwg.mxu0
      %862 = vmatpush.msra.mxu0 0.0
      %863 = vmatpush.msra.mxu0 0.0
      %864 = vmatpush.msra.mxu0 0.0
      %865 = vmatpush.msra.mxu0 0.0
      %866 = vmatpush.msra.mxu0 0.0
      %867 = vmatpush.msra.mxu0 %v797
      %868 = vmatpush.msra.mxu0 %v795
      %869 = vmatpush.msra.mxu0 %v793
      %870 = vmatpush.msra.mxu0 %v791
      %871 = vmatpush.msra.mxu0 %v789
      %872 = vmatpush.msra.mxu0 %v787
      %873 = vmatpush.msra.mxu0 %v785
      %874 = vmatpush.msra.mxu0 %v783
      %875 = vmatpush.msra.mxu0 %v781
      %876 = vmatpush.msra.mxu0 %v779
      %877 = vmatpush.msra.mxu0 %v777
      %878 = vmatmul.f32.gmra.mxu0 %v800
      %v879 = vpop.f32.mrf.mxu0
      %v880 = vadd.f32 %v860, %v879
      %881 = vdwg.mxu0
      %v882 = vld [vmem:[%s366] sm:$0x3]
      %v884 = vperm.slane %v882, 0
      %v885 = vperm.slane %v882, 1
      %v888 = vmul.f32 %v840, %v884
      %v889 = vmul.f32 %v880, %v885
      %890 = vst [vmem:[%s376] sm:$0xff] %v888
      %891 = vst [vmem:[%s376 + $0x8] sm:$0xff] %v889
      %v892 = vadd.f32 %v888, %v889
      %893 = vadd.xlane.f32.xlu0 %v892
      %v894 = vpop.xlane.xlu0 %893
      %vm895 = vcmask 7168
      %896 = vst.msk [vmem:[%s385] sm:$0xff] %vm895, %v894
      %v897 = vmul.f32 %v888, %v888
      %v898 = vmul.f32 %v889, %v889
      %v899 = vadd.f32 %v897, %v898
      %900 = vadd.xlane.f32.xlu0 %v899
      %v901 = vpop.xlane.xlu0 %900
      %902 = vst.msk [vmem:[%s393] sm:$0xff] %vm895, %v901
      %s903 = smul.u32 2, %s23
      %p904 = scmp.lt.s32.totalorder %s22, 1
      %s905 = scalar_select %p904, %s22, 1
      %p906 = scmp.lt.s32.totalorder %s903, 7
      %s907 = scalar_select %p906, %s903, 7
      %s908 = smul.addr %s905, 8
      %s909 = sadd.s32 %s907, %s908
      %s910 = smul.addr %s909, 8
      %s911 = scalar_lea.vmem %s4, %s910
      %p912 = scmp.lt.s32.totalorder %s22, 1
      %s913 = scalar_select %p912, %s22, 1
      %p914 = scmp.lt.s32.totalorder %s23, 3
      %s915 = scalar_select %p914, %s23, 3
      %s916 = smul.addr %s913, 4
      %s917 = sadd.s32 %s915, %s916
      %s918 = smul.addr %s917, 8
      %s919 = scalar_lea.vmem %s5, %s918
      %p920 = scmp.lt.s32.totalorder %s22, 1
      %s921 = scalar_select %p920, %s22, 1
      %p922 = scmp.lt.s32.totalorder %s23, 3
      %s923 = scalar_select %p922, %s23, 3
      %s924 = smul.addr %s921, 4
      %s925 = sadd.s32 %s923, %s924
      %s926 = smul.addr %s925, 8
      %s927 = scalar_lea.vmem %s6, %s926
      // Predicated region
      $region37: #{basic_block_3d.4} parent=35 // pred_check
        %p928 = pneg %p155
      $region38: #{basic_block_3d.4} parent=35 // pred_check_branch
        %930 = sbr.rel (%p928) target = $region40
      $region39: #{basic_block_3d.4} parent=35 // pred_region
        %s931 = smul.u32 2, %s23
      $region40: #{basic_block_3d.4} parent=35 // pred_fallthru
        _
      // Predicated region
      $region41: #{basic_block_3d.4} parent=35 // pred_check
        %p932 = pneg %p183
      $region42: #{basic_block_3d.4} parent=35 // pred_check_branch
        %934 = sbr.rel (%p932) target = $region44
      $region43: #{basic_block_3d.4} parent=35 // pred_region
        _
      $region44: #{basic_block_3d.4} parent=35 // pred_fallthru
        _
      // Predicated region
      $region45: #{basic_block_3d.4} parent=35 // pred_check
        %p935 = pneg %p211
      $region46: #{basic_block_3d.4} parent=35 // pred_check_branch
        %937 = sbr.rel (%p935) target = $region48
      $region47: #{basic_block_3d.4} parent=35 // pred_region
        _
      $region48: #{basic_block_3d.4} parent=35 // pred_fallthru
        _
    $region36: #{basic_block_3d.4} parent=5 // pred_fallthru
      _
    %p938 = scmp.le.s32.totalorder 2, %s13
    // Predicated region
    $region49: #{basic_block_3d.4} parent=5 // pred_check
      %p939 = pneg %p938
    $region50: #{basic_block_3d.4} parent=5 // pred_check_branch
      %941 = sbr.rel (%p939) target = $region52
    $region51: #{basic_block_3d.4} parent=5 // pred_region
      %s942 = ssub.s32 %s13, 2
      // Predicated region
      $region53: #{basic_block_3d.4} parent=51 // pred_check
        %p943 = pneg %p161
      $region54: #{basic_block_3d.4} parent=51 // pred_check_branch
        %945 = sbr.rel (%p943) target = $region56
      $region55: #{basic_block_3d.4} parent=51 // pred_region
        %s946 = smul.u32 2, %s25
        %p947 = scmp.lt.s32.totalorder %s24, 1
        %s948 = scalar_select %p947, %s24, 1
        %p949 = scmp.lt.s32.totalorder %s946, 7
        %s950 = scalar_select %p949, %s946, 7
        %s951 = smul.addr %s948, 8
        %s952 = sadd.s32 %s950, %s951
        %s953 = smul.addr %s952, 8
        %s954 = scalar_lea.vmem %s4, %s953
      $region56: #{basic_block_3d.4} parent=51 // pred_fallthru
        _
      // Predicated region
      $region57: #{basic_block_3d.4} parent=51 // pred_check
        %p955 = pneg %p189
      $region58: #{basic_block_3d.4} parent=51 // pred_check_branch
        %957 = sbr.rel (%p955) target = $region60
      $region59: #{basic_block_3d.4} parent=51 // pred_region
        %p958 = scmp.lt.s32.totalorder %s24, 1
        %s959 = scalar_select %p958, %s24, 1
        %p960 = scmp.lt.s32.totalorder %s25, 3
        %s961 = scalar_select %p960, %s25, 3
        %s962 = smul.addr %s959, 4
        %s963 = sadd.s32 %s961, %s962
        %s964 = smul.addr %s963, 8
        %s965 = scalar_lea.vmem %s5, %s964
      $region60: #{basic_block_3d.4} parent=51 // pred_fallthru
        _
      // Predicated region
      $region61: #{basic_block_3d.4} parent=51 // pred_check
        %p966 = pneg %p217
      $region62: #{basic_block_3d.4} parent=51 // pred_check_branch
        %968 = sbr.rel (%p966) target = $region64
      $region63: #{basic_block_3d.4} parent=51 // pred_region
        %p969 = scmp.lt.s32.totalorder %s24, 1
        %s970 = scalar_select %p969, %s24, 1
        %p971 = scmp.lt.s32.totalorder %s25, 3
        %s972 = scalar_select %p971, %s25, 3
        %s973 = smul.addr %s970, 4
        %s974 = sadd.s32 %s972, %s973
        %s975 = smul.addr %s974, 8
        %s976 = scalar_lea.vmem %s6, %s975
      $region64: #{basic_block_3d.4} parent=51 // pred_fallthru
        _
    $region52: #{basic_block_3d.4} parent=5 // pred_fallthru
      _
  $region6: #{basic_block_3d.4} parent=0 // loop_footer
    %s17 = sadd.s32 1, %s13
  $region7: #{basic_block_3d.4} parent=0 // loop_footer_branch
    %12 = sbr.rel target = $region3
  $region8: #{basic_block_3d.4} parent=0 // loop_exit
    _

// kernel: basic_block_3d.7
$region0: #{basic_block_3d.7}
  #allocation0 [shape = 'u32[]', space=smem, size = 0x4, offset = 0x4, fixed_abs, tag = 'smem constant byte address 0x4 - core index']
  #allocation1 [shape = 'u32[72,128]{1,0:T(1,128)}', space=vmem, size = 0x9000, scoped, tag = 'internal scratch']
  %s0 = inlined_call_operand.vmem [shape: f32[2,8,1024], index: 0, kind: input, shape index: {}]
  %s1 = inlined_call_operand.vmem [shape: f32[8,1], index: 1, kind: input, shape index: {}]
  %s2 = inlined_call_operand.vmem [shape: f32[8,1], index: 2, kind: input, shape index: {}]
  %s3 = inlined_call_operand.vmem [shape: f32[1,1024], index: 3, kind: input, shape index: {}]
  %s4 = inlined_call_operand.vmem [shape: f32[2,8,1024], index: 4, kind: input, shape index: {}]
  %s5 = inlined_call_operand.vmem [shape: f32[2,8,1024], index: 5, kind: output, shape index: {}]
  %s6 = sld [smem:[#allocation0]]
  $region53: #{basic_block_3d.7} parent=0
    _
  %s8 = ssub.s32 1, %s6
  %s9 = scalar_select 0, %s8, %s6
  loop: start=0, step=1, limit=10
  $region2: #{basic_block_3d.7} parent=0 // loop_pre_header
    _
  $region3: #{basic_block_3d.7} parent=0 // loop_header
    %s11 = sphi 0, %s15
    %p12 = scmp.ge.s32.totalorder %s11, 10
    %s18 = sphi 0, %s30
    %s19 = sphi 0, %s26
    %s20 = sphi 0, %s18
    %s21 = sphi 0, %s19
    %s22 = sphi 0, %s20
    %s23 = sphi 0, %s21
    %s35 = sphi 0, %s37
    %s38 = sphi 0, %s35
    %s39 = sphi 0, %s38
    %s55 = sphi 0, %s39
    %s59 = sphi 0, %s59
    %s61 = sphi 0, %s59
    %s62 = sphi 0, %s61
    %s76 = sphi 0, %s62
    %s80 = sphi 0, %s80
    %s82 = sphi 0, %s80
    %s83 = sphi 0, %s82
    %s97 = sphi 0, %s83
    %s103 = sphi 0, %s105
    %s106 = sphi 0, %s103
    %s107 = sphi 0, %s106
    %s123 = sphi 0, %s107
    %s131 = sphi 0, %s133
    %s134 = sphi 0, %s131
    %s135 = sphi 0, %s134
    %s151 = sphi 0, %s135
    %s159 = sphi 0, %s161
    %s162 = sphi 0, %s159
    %s163 = sphi 0, %s162
    %s179 = sphi 0, %s163
  $region4: #{basic_block_3d.7} parent=0 // loop_header_branch
    %14 = sbr.rel (%p12) target = $region8
  $region5: #{basic_block_3d.7} parent=0 // loop_body
    %s16 = ssub.s32 %s11, 1
    %s17 = ssub.s32 %s11, 2
    %s24 = sadd.s32 1, %s19
    %p25 = scmp.ge.s32.totalorder %s24, 4
    %s26 = scalar_select %p25, 0, %s24
    %s27 = sadd.s32 1, %s18
    %s28 = scalar_select %p25, %s27, %s18
    %p29 = scmp.ge.s32.totalorder %s28, 2
    %s30 = scalar_select %p29, 0, %s28
    %s31 = ssub.s32 %s18, %s30
    %s32 = ssub.s32 %s19, %s26
    %s33 = sor.u32 %s31, %s32
    %p34 = scmp.eq.s32.totalorder %s33, 0
    %s36 = sadd.s32 %s35, 1
    %s37 = scalar_select %p34, %s35, %s36
    %p40 = pneg %p34
    %p41 = scmp.eq.s32.totalorder %s11, 7
    %p42 = por %p40, %p41
    %p43 = scmp.ne.s32.totalorder %s35, %s38
    %p44 = scmp.eq.s32.totalorder %s11, 0
    %p45 = por %p43, %p44
    %p46 = scmp.ne.s32.totalorder %s35, %s38
    %p47 = scmp.eq.s32.totalorder %s16, 7
    %p48 = por %p46, %p47
    %p49 = scmp.ne.s32.totalorder %s38, %s39
    %p50 = scmp.eq.s32.totalorder %s16, 0
    %p51 = por %p49, %p50
    %p52 = scmp.ne.s32.totalorder %s38, %s39
    %p53 = scmp.eq.s32.totalorder %s17, 7
    %p54 = por %p52, %p53
    %p56 = scmp.ne.s32.totalorder %s39, %s55
    %p57 = scmp.eq.s32.totalorder %s17, 0
    %p58 = por %p56, %p57
    %s60 = sadd.s32 %s59, 1
    %p63 = scmp.eq.s32.totalorder %s11, 7
    %p64 = scmp.ne.s32.totalorder %s59, %s61
    %p65 = scmp.eq.s32.totalorder %s11, 0
    %p66 = por %p64, %p65
    %p67 = scmp.ne.s32.totalorder %s59, %s61
    %p68 = scmp.eq.s32.totalorder %s16, 7
    %p69 = por %p67, %p68
    %p70 = scmp.ne.s32.totalorder %s61, %s62
    %p71 = scmp.eq.s32.totalorder %s16, 0
    %p72 = por %p70, %p71
    %p73 = scmp.ne.s32.totalorder %s61, %s62
    %p74 = scmp.eq.s32.totalorder %s17, 7
    %p75 = por %p73, %p74
    %p77 = scmp.ne.s32.totalorder %s62, %s76
    %p78 = scmp.eq.s32.totalorder %s17, 0
    %p79 = por %p77, %p78
    %s81 = sadd.s32 %s80, 1
    %p84 = scmp.eq.s32.totalorder %s11, 7
    %p85 = scmp.ne.s32.totalorder %s80, %s82
    %p86 = scmp.eq.s32.totalorder %s11, 0
    %p87 = por %p85, %p86
    %p88 = scmp.ne.s32.totalorder %s80, %s82
    %p89 = scmp.eq.s32.totalorder %s16, 7
    %p90 = por %p88, %p89
    %p91 = scmp.ne.s32.totalorder %s82, %s83
    %p92 = scmp.eq.s32.totalorder %s16, 0
    %p93 = por %p91, %p92
    %p94 = scmp.ne.s32.totalorder %s82, %s83
    %p95 = scmp.eq.s32.totalorder %s17, 7
    %p96 = por %p94, %p95
    %p98 = scmp.ne.s32.totalorder %s83, %s97
    %p99 = scmp.eq.s32.totalorder %s17, 0
    %p100 = por %p98, %p99
    %s101 = ssub.s32 %s19, %s26
    %p102 = scmp.eq.s32.totalorder %s101, 0
    %s104 = sadd.s32 %s103, 1
    %s105 = scalar_select %p102, %s103, %s104
    %p108 = pneg %p102
    %p109 = scmp.eq.s32.totalorder %s11, 7
    %p110 = por %p108, %p109
    %p111 = scmp.ne.s32.totalorder %s103, %s106
    %p112 = scmp.eq.s32.totalorder %s11, 0
    %p113 = por %p111, %p112
    %p114 = scmp.ne.s32.totalorder %s103, %s106
    %p115 = scmp.eq.s32.totalorder %s16, 7
    %p116 = por %p114, %p115
    %p117 = scmp.ne.s32.totalorder %s106, %s107
    %p118 = scmp.eq.s32.totalorder %s16, 0
    %p119 = por %p117, %p118
    %p120 = scmp.ne.s32.totalorder %s106, %s107
    %p121 = scmp.eq.s32.totalorder %s17, 7
    %p122 = por %p120, %p121
    %p124 = scmp.ne.s32.totalorder %s107, %s123
    %p125 = scmp.eq.s32.totalorder %s17, 0
    %p126 = por %p124, %p125
    %s127 = ssub.s32 %s18, %s30
    %s128 = ssub.s32 %s19, %s26
    %s129 = sor.u32 %s127, %s128
    %p130 = scmp.eq.s32.totalorder %s129, 0
    %s132 = sadd.s32 %s131, 1
    %s133 = scalar_select %p130, %s131, %s132
    %p136 = pneg %p130
    %p137 = scmp.eq.s32.totalorder %s11, 7
    %p138 = por %p136, %p137
    %p139 = scmp.ne.s32.totalorder %s131, %s134
    %p140 = scmp.eq.s32.totalorder %s11, 0
    %p141 = por %p139, %p140
    %p142 = scmp.ne.s32.totalorder %s131, %s134
    %p143 = scmp.eq.s32.totalorder %s16, 7
    %p144 = por %p142, %p143
    %p145 = scmp.ne.s32.totalorder %s134, %s135
    %p146 = scmp.eq.s32.totalorder %s16, 0
    %p147 = por %p145, %p146
    %p148 = scmp.ne.s32.totalorder %s134, %s135
    %p149 = scmp.eq.s32.totalorder %s17, 7
    %p150 = por %p148, %p149
    %p152 = scmp.ne.s32.totalorder %s135, %s151
    %p153 = scmp.eq.s32.totalorder %s17, 0
    %p154 = por %p152, %p153
    %s155 = ssub.s32 %s18, %s30
    %s156 = ssub.s32 %s19, %s26
    %s157 = sor.u32 %s155, %s156
    %p158 = scmp.eq.s32.totalorder %s157, 0
    %s160 = sadd.s32 %s159, 1
    %s161 = scalar_select %p158, %s159, %s160
    %p164 = pneg %p158
    %p165 = scmp.eq.s32.totalorder %s11, 7
    %p166 = por %p164, %p165
    %p167 = scmp.ne.s32.totalorder %s159, %s162
    %p168 = scmp.eq.s32.totalorder %s11, 0
    %p169 = por %p167, %p168
    %p170 = scmp.ne.s32.totalorder %s159, %s162
    %p171 = scmp.eq.s32.totalorder %s16, 7
    %p172 = por %p170, %p171
    %p173 = scmp.ne.s32.totalorder %s162, %s163
    %p174 = scmp.eq.s32.totalorder %s16, 0
    %p175 = por %p173, %p174
    %p176 = scmp.ne.s32.totalorder %s162, %s163
    %p177 = scmp.eq.s32.totalorder %s17, 7
    %p178 = por %p176, %p177
    %p180 = scmp.ne.s32.totalorder %s163, %s179
    %p181 = scmp.eq.s32.totalorder %s17, 0
    %p182 = por %p180, %p181
    %p183 = scmp.le.s32.totalorder 1, %s11
    %p184 = scmp.lt.s32.totalorder %s11, 9
    %p185 = pnand %p183, %p184
    %p186 = pneg %p185
    // Predicated region
    $region9: #{basic_block_3d.7} parent=5 // pred_check
      _
    $region10: #{basic_block_3d.7} parent=5 // pred_check_branch
      %188 = sbr.rel (%p185) target = $region12
    $region11: #{basic_block_3d.7} parent=5 // pred_region
      %s189 = ssub.s32 %s11, 1
      // Predicated region
      $region13: #{basic_block_3d.7} parent=11 // pred_check
        %p190 = pneg %p72
      $region14: #{basic_block_3d.7} parent=11 // pred_check_branch
        %192 = sbr.rel (%p190) target = $region16
      $region15: #{basic_block_3d.7} parent=11 // pred_region
        _
      $region16: #{basic_block_3d.7} parent=11 // pred_fallthru
        _
      // Predicated region
      $region17: #{basic_block_3d.7} parent=11 // pred_check
        %p193 = pneg %p93
      $region18: #{basic_block_3d.7} parent=11 // pred_check_branch
        %195 = sbr.rel (%p193) target = $region20
      $region19: #{basic_block_3d.7} parent=11 // pred_region
        _
      $region20: #{basic_block_3d.7} parent=11 // pred_fallthru
        _
    $region12: #{basic_block_3d.7} parent=5 // pred_fallthru
      _
    %p196 = scmp.lt.s32.totalorder %s11, 8
    // Predicated region
    $region21: #{basic_block_3d.7} parent=5 // pred_check
      %p197 = pneg %p196
    $region22: #{basic_block_3d.7} parent=5 // pred_check_branch
      %199 = sbr.rel (%p197) target = $region24
    $region23: #{basic_block_3d.7} parent=5 // pred_region
      // Predicated region
      $region25: #{basic_block_3d.7} parent=23 // pred_check
        %p200 = pneg %p45
      $region26: #{basic_block_3d.7} parent=23 // pred_check_branch
        %202 = sbr.rel (%p200) target = $region28
      $region27: #{basic_block_3d.7} parent=23 // pred_region
        %s203 = smul.u32 2, %s19
        %p204 = scmp.lt.s32.totalorder %s18, 1
        %s205 = scalar_select %p204, %s18, 1
        %p206 = scmp.lt.s32.totalorder %s203, 7
        %s207 = scalar_select %p206, %s203, 7
        %s208 = smul.addr %s205, 8
        %s209 = sadd.s32 %s207, %s208
        %s210 = smul.addr %s209, 8
        %s211 = scalar_lea.vmem %s0, %s210
        %s212 = smul.u32 2, %s19
      $region28: #{basic_block_3d.7} parent=23 // pred_fallthru
        _
      // Predicated region
      $region29: #{basic_block_3d.7} parent=23 // pred_check
        %p213 = pneg %p113
      $region30: #{basic_block_3d.7} parent=23 // pred_check_branch
        %215 = sbr.rel (%p213) target = $region32
      $region31: #{basic_block_3d.7} parent=23 // pred_region
        %s216 = smul.u32 2, %s19
        %p217 = scmp.lt.s32.totalorder %s216, 7
        %s218 = scalar_select %p217, %s216, 7
        %s219 = scalar_lea.vmem %s3, %s218
        %s220 = smul.u32 2, %s19
      $region32: #{basic_block_3d.7} parent=23 // pred_fallthru
        _
      // Predicated region
      $region33: #{basic_block_3d.7} parent=23 // pred_check
        %p221 = pneg %p141
      $region34: #{basic_block_3d.7} parent=23 // pred_check_branch
        %223 = sbr.rel (%p221) target = $region36
      $region35: #{basic_block_3d.7} parent=23 // pred_region
        %s224 = smul.u32 2, %s19
        %p225 = scmp.lt.s32.totalorder %s18, 1
        %s226 = scalar_select %p225, %s18, 1
        %p227 = scmp.lt.s32.totalorder %s224, 7
        %s228 = scalar_select %p227, %s224, 7
        %s229 = smul.addr %s226, 8
        %s230 = sadd.s32 %s228, %s229
        %s231 = smul.addr %s230, 8
        %s232 = scalar_lea.vmem %s4, %s231
        %s233 = smul.u32 2, %s19
      $region36: #{basic_block_3d.7} parent=23 // pred_fallthru
        _
    $region24: #{basic_block_3d.7} parent=5 // pred_fallthru
      _
    %p234 = scmp.le.s32.totalorder 1, %s11
    %p235 = scmp.lt.s32.totalorder %s11, 9
    %p236 = pnand %p234, %p235
    %p237 = pneg %p236
    // Predicated region
    $region37: #{basic_block_3d.7} parent=5 // pred_check
      _
    $region38: #{basic_block_3d.7} parent=5 // pred_check_branch
      %239 = sbr.rel (%p236) target = $region40
    $region39: #{basic_block_3d.7} parent=5 // pred_region
      %s240 = ssub.s32 %s11, 1
      %s241 = smul.u32 2, %s21
      %p242 = scmp.lt.s32.totalorder %s20, 1
      %s243 = scalar_select %p242, %s20, 1
      %p244 = scmp.lt.s32.totalorder %s241, 7
      %s245 = scalar_select %p244, %s241, 7
      %s246 = smul.addr %s243, 8
      %s247 = sadd.s32 %s245, %s246
      %s248 = smul.addr %s247, 8
      %s249 = scalar_lea.vmem %s0, %s248
      %p250 = pneg %p51
      %p251 = pneg %p48
      %p252 = pneg %p72
      %p253 = pneg %p69
      %p254 = pneg %p93
      %p255 = pneg %p90
      %s256 = smul.u32 2, %s21
      %p257 = scmp.lt.s32.totalorder %s256, 7
      %s258 = scalar_select %p257, %s256, 7
      %s259 = scalar_lea.vmem %s3, %s258
      %p260 = pneg %p119
      %p261 = pneg %p116
      %s262 = smul.u32 2, %s21
      %p263 = scmp.lt.s32.totalorder %s20, 1
      %s264 = scalar_select %p263, %s20, 1
      %p265 = scmp.lt.s32.totalorder %s262, 7
      %s266 = scalar_select %p265, %s262, 7
      %s267 = smul.addr %s264, 8
      %s268 = sadd.s32 %s266, %s267
      %s269 = smul.addr %s268, 8
      %s270 = scalar_lea.vmem %s4, %s269
      %p271 = pneg %p147
      %p272 = pneg %p144
      %p273 = pneg %p175
      %p274 = pneg %p172
      %s275 = smul.u32 2, %s21
      %p276 = scmp.lt.s32.totalorder %s20, 1
      %s277 = scalar_select %p276, %s20, 1
      %p278 = scmp.lt.s32.totalorder %s275, 7
      %s279 = scalar_select %p278, %s275, 7
      %s280 = smul.addr %s277, 8
      %s281 = sadd.s32 %s279, %s280
      %s282 = smul.addr %s281, 8
      %s283 = scalar_lea.vmem %s5, %s282
      %s284 = smul.u32 2, %s21
      %p285 = scmp.lt.s32.totalorder %s20, 1
      %s286 = scalar_select %p285, %s20, 1
      %p287 = scmp.lt.s32.totalorder %s284, 7
      %s288 = scalar_select %p287, %s284, 7
      %s289 = smul.addr %s286, 8
      %s290 = sadd.s32 %s288, %s289
      %s291 = smul.addr %s290, 8
      %s292 = scalar_lea.vmem %s0, %s291
      %s293 = smul.u32 2, %s21
      %s294 = smul.u32 2, %s21
      %p295 = scmp.lt.s32.totalorder %s294, 7
      %s296 = scalar_select %p295, %s294, 7
      %s297 = scalar_lea.vmem %s3, %s296
      %s298 = smul.u32 2, %s21
      %s299 = smul.u32 2, %s21
      %p300 = scmp.lt.s32.totalorder %s20, 1
      %s301 = scalar_select %p300, %s20, 1
      %p302 = scmp.lt.s32.totalorder %s299, 7
      %s303 = scalar_select %p302, %s299, 7
      %s304 = smul.addr %s301, 8
      %s305 = sadd.s32 %s303, %s304
      %s306 = smul.addr %s305, 8
      %s307 = scalar_lea.vmem %s4, %s306
      %s308 = smul.u32 2, %s21
      %s309 = smul.u32 2, %s21
      %p310 = scmp.lt.s32.totalorder %s20, 1
      %s311 = scalar_select %p310, %s20, 1
      %p312 = scmp.lt.s32.totalorder %s309, 7
      %s313 = scalar_select %p312, %s309, 7
      %s314 = smul.addr %s311, 8
      %s315 = sadd.s32 %s313, %s314
      %s316 = smul.addr %s315, 8
      %s317 = scalar_lea.vmem %s5, %s316
      %s318 = smul.u32 2, %s21
      %v319 = vld [vmem:[%s292] sm:$0xff]
      %v320 = vld [vmem:[%s292 + $0x8] sm:$0xff]
      %v321 = vld [vmem:[%s1] sm:$0xff]
      %323 = vset.pattern.permute.xlu0 0
      %324 = vperm.xlu0 %323, %v321
      %v325 = vpop.permute.xlu0 %324
      %v327 = vmul.f32 %v319, %v325
      %v328 = vmul.f32 %v320, %v325
      %v329 = vld [vmem:[%s2] sm:$0xff]
      %331 = vset.pattern.permute.xlu0 0
      %332 = vperm.xlu0 %331, %v329
      %v333 = vpop.permute.xlu0 %332
      %v335 = vadd.f32 %v327, %v333
      %v336 = vadd.f32 %v328, %v333
      %v337 = vld [vmem:[%s307] sm:$0xff]
      %v338 = vld [vmem:[%s307 + $0x8] sm:$0xff]
      %v339 = vadd.f32 %v335, %v337
      %v340 = vadd.f32 %v336, %v338
      %v341 = vmax.f32 %v339, 0.0
      %v342 = vmax.f32 %v340, 0.0
      %v343 = vld [vmem:[%s297] sm:$0x3]
      %v345 = vperm.slane %v343, 0
      %v346 = vperm.slane %v343, 1
      %v349 = vmul.f32 %v341, %v345
      %v350 = vmul.f32 %v342, %v346
      %351 = vst [vmem:[%s317] sm:$0xff] %v349
      %352 = vst [vmem:[%s317 + $0x8] sm:$0xff] %v350
      %s353 = smul.u32 2, %s21
      %p354 = scmp.lt.s32.totalorder %s20, 1
      %s355 = scalar_select %p354, %s20, 1
      %p356 = scmp.lt.s32.totalorder %s353, 7
      %s357 = scalar_select %p356, %s353, 7
      %s358 = smul.addr %s355, 8
      %s359 = sadd.s32 %s357, %s358
      %s360 = smul.addr %s359, 8
      %s361 = scalar_lea.vmem %s5, %s360
      // Predicated region
      $region41: #{basic_block_3d.7} parent=39 // pred_check
        %p362 = pneg %p172
      $region42: #{basic_block_3d.7} parent=39 // pred_check_branch
        %364 = sbr.rel (%p362) target = $region44
      $region43: #{basic_block_3d.7} parent=39 // pred_region
        %s365 = smul.u32 2, %s21
      $region44: #{basic_block_3d.7} parent=39 // pred_fallthru
        _
    $region40: #{basic_block_3d.7} parent=5 // pred_fallthru
      _
    %p366 = scmp.le.s32.totalorder 2, %s11
    // Predicated region
    $region45: #{basic_block_3d.7} parent=5 // pred_check
      %p367 = pneg %p366
    $region46: #{basic_block_3d.7} parent=5 // pred_check_branch
      %369 = sbr.rel (%p367) target = $region48
    $region47: #{basic_block_3d.7} parent=5 // pred_region
      %s370 = ssub.s32 %s11, 2
      // Predicated region
      $region49: #{basic_block_3d.7} parent=47 // pred_check
        %p371 = pneg %p178
      $region50: #{basic_block_3d.7} parent=47 // pred_check_branch
        %373 = sbr.rel (%p371) target = $region52
      $region51: #{basic_block_3d.7} parent=47 // pred_region
        %s374 = smul.u32 2, %s23
        %p375 = scmp.lt.s32.totalorder %s22, 1
        %s376 = scalar_select %p375, %s22, 1
        %p377 = scmp.lt.s32.totalorder %s374, 7
        %s378 = scalar_select %p377, %s374, 7
        %s379 = smul.addr %s376, 8
        %s380 = sadd.s32 %s378, %s379
        %s381 = smul.addr %s380, 8
        %s382 = scalar_lea.vmem %s5, %s381
      $region52: #{basic_block_3d.7} parent=47 // pred_fallthru
        _
    $region48: #{basic_block_3d.7} parent=5 // pred_fallthru
      _
  $region6: #{basic_block_3d.7} parent=0 // loop_footer
    %s15 = sadd.s32 1, %s11
  $region7: #{basic_block_3d.7} parent=0 // loop_footer_branch
    %10 = sbr.rel target = $region3
  $region8: #{basic_block_3d.7} parent=0 // loop_exit
    _

</llo_original>
